<compile_context>
chip_gen: v6e
topology: v6e:2x2x1
jax: 0.10.0
libtpu: 0.0.40
codegen_flags: <defaults>
</compile_context>

<pallas_src>
import functools

import jax
import jax.numpy as jnp
import numpy as np
from jax.experimental import pallas as pl
from jax.experimental.pallas import tpu as pltpu

EPS = 1e-5


# ---------------------------------------------------------------------------
# kernel
# ---------------------------------------------------------------------------
def residual_block_kernel(x_ref, shift_ref, b1_ref, b2_ref, proj_ref,
                          g1_ref, be1_ref, g2_ref, be2_ref, out_ref,
                          *, inv_count):
    """Fused conv-bn-relu-conv-bn-add-relu on lane-packed activations.

    x_ref     : (M, L)      input,  M = N*H rows, L = W*C lanes
    shift_ref : (2, M, M)   row-shift operators (dh = -1, +1) with the
                            per-image H-border zeros baked in
    b1_ref    : (3, L, L)   banded conv1 weights, one (L, L) matrix per kh tap
                            (kw taps + W-border zeros baked into the band)
    b2_ref    : (3, L, L)   banded conv2 weights
    proj_ref  : (L, L)      0/1 channel projector: P[i, j] = (i % C == j % C)
    g*/be*    : (1, L)      per-lane tiled BN gamma / beta
    out_ref   : (M, L)      output
    """
    f32 = jnp.float32
    x = x_ref[...].astype(f32)
    s_up = shift_ref[0]     # (s_up @ a)[r] = a[r-1]  (zero at each image's top row)
    s_dn = shift_ref[1]     # (s_dn @ a)[r] = a[r+1]  (zero at each image's bottom row)
    proj = proj_ref[...]

    def conv3x3(a, b_ref):
        # out = sum_kh shift_kh(a) @ B_kh  -- three lane-dense MXU matmuls
        up = jnp.dot(s_up, a, preferred_element_type=f32)
        dn = jnp.dot(s_dn, a, preferred_element_type=f32)
        acc = jnp.dot(up, b_ref[0], preferred_element_type=f32)
        acc += jnp.dot(a, b_ref[1], preferred_element_type=f32)
        acc += jnp.dot(dn, b_ref[2], preferred_element_type=f32)
        return acc

    def batchnorm(y, gamma, beta):
        # one-pass batch stats (sum / sum-of-squares); the cross-lane
        # (per-channel) reduction and the broadcast back per lane are done by
        # a single 0/1 projector matmul, avoiding any lane<->sublane relayout.
        ch_sum = jnp.sum(jnp.dot(y, proj, preferred_element_type=f32),
                         axis=0, keepdims=True)
        ch_sumsq = jnp.sum(jnp.dot(y * y, proj, preferred_element_type=f32),
                           axis=0, keepdims=True)
        mean = ch_sum * inv_count
        var = ch_sumsq * inv_count - mean * mean          # biased variance
        inv = jax.lax.rsqrt(var + EPS)
        return (y - mean) * (inv * gamma) + beta

    h1 = jnp.maximum(batchnorm(conv3x3(x, b1_ref), g1_ref[...], be1_ref[...]),
                     0.0)                                  # conv1 + bn1 + relu
    h2 = batchnorm(conv3x3(h1, b2_ref), g2_ref[...], be2_ref[...])  # conv2+bn2
    out_ref[...] = jnp.maximum(h2 + x, 0.0).astype(out_ref.dtype)   # +id, relu


# ---------------------------------------------------------------------------
# wrapper-side weight / operator preparation (layout plumbing, done in XLA/np)
# ---------------------------------------------------------------------------
def _banded_conv_weights(w_hwio, W):
    """(3, 3, Cin, Cout) HWIO -> (3, W*Cin, W*Cout) banded matrices B_kh with
    B_kh[w_in*Cin + ci, w_out*Cout + co] = w[kh, kw, ci, co], kw = w_in - w_out + 1
    (entries outside the 3-wide band / image border are zero)."""
    K1, K2, Cin, Cout = w_hwio.shape
    sel = np.zeros((K2, W, W), np.float32)
    for kw in range(K2):
        for wo in range(W):
            wi = wo + kw - 1
            if 0 <= wi < W:
                sel[kw, wi, wo] = 1.0
    band = jnp.einsum('kab,hkio->haibo', jnp.asarray(sel),
                      w_hwio.astype(jnp.float32))
    return band.reshape(K1, W * Cin, W * Cout)


def _row_shift_ops(N, H):
    """(2, M, M): S[0]@a -> a[r-1] (zero at each image's first row),
                  S[1]@a -> a[r+1] (zero at each image's last row)."""
    M = N * H
    S = np.zeros((2, M, M), np.float32)
    for n in range(N):
        for h in range(H):
            r = n * H + h
            if h >= 1:
                S[0, r, r - 1] = 1.0
            if h <= H - 2:
                S[1, r, r + 1] = 1.0
    return jnp.asarray(S)


def _channel_projector(W, C):
    lane_c = np.arange(W * C) % C
    return jnp.asarray((lane_c[:, None] == lane_c[None, :]).astype(np.float32))


def residual_block(x_nchw, w1, gamma1, beta1, w2, gamma2, beta2):
    """NCHW in / NCHW out. Conv weights are HWIO (3,3,Cin,Cout); gamma/beta are
    per-channel (C,). The whole hot path runs in a single Pallas kernel."""
    N, C, H, W = x_nchw.shape
    Cout = w1.shape[-1]
    assert C == Cout and w2.shape[-1] == Cout, "downsample=None needs Cin == Cout"
    M, L = N * H, W * C

    # layout plumbing: NCHW -> NHWC -> lane-packed (N*H, W*C)
    x2d = jnp.transpose(x_nchw, (0, 2, 3, 1)).reshape(M, L)

    b1_band = _banded_conv_weights(w1, W)
    b2_band = _banded_conv_weights(w2, W)
    shift = _row_shift_ops(N, H)
    proj = _channel_projector(W, C)

    def tile_lane(v):                       # (C,) -> (1, W*C), lane = w*C + c
        return jnp.tile(v.astype(jnp.float32).reshape(1, C), (1, W))

    kernel = functools.partial(residual_block_kernel,
                               inv_count=1.0 / float(N * H * W))

    out2d = pl.pallas_call(
        kernel,
        out_shape=jax.ShapeDtypeStruct((M, L), x_nchw.dtype),
        in_specs=[pl.BlockSpec(memory_space=pltpu.MemorySpace.VMEM)] * 9,
        out_specs=pl.BlockSpec(memory_space=pltpu.MemorySpace.VMEM),
        compiler_params=pltpu.CompilerParams(
            vmem_limit_bytes=32 * 1024 * 1024),   # safe on v5e/v6e/v7x
    )(x2d, shift, b1_band, b2_band, proj,
      tile_lane(gamma1), tile_lane(beta1), tile_lane(gamma2), tile_lane(beta2))

    return jnp.transpose(out2d.reshape(N, H, W, C), (0, 3, 1, 2))


# ---------------------------------------------------------------------------
# pure-JAX reference (same semantics) for the in-script sanity check
# ---------------------------------------------------------------------------
def reference_forward(x_nchw, w1, gamma1, beta1, w2, gamma2, beta2):
    x = jnp.transpose(x_nchw, (0, 2, 3, 1)).astype(jnp.float32)
    dn = jax.lax.conv_dimension_numbers(x.shape, w1.shape,
                                        ('NHWC', 'HWIO', 'NHWC'))

    def bn(h, g, b):
        mean = jnp.mean(h, axis=(0, 1, 2), keepdims=True)
        var = jnp.mean((h - mean) ** 2, axis=(0, 1, 2), keepdims=True)
        return ((h - mean) * jax.lax.rsqrt(var + EPS)
                * g.reshape(1, 1, 1, -1) + b.reshape(1, 1, 1, -1))

    h = jax.lax.conv_general_dilated(x, w1.astype(jnp.float32), (1, 1), 'SAME',
                                     dimension_numbers=dn)
    h = jnp.maximum(bn(h, gamma1, beta1), 0.0)
    h2 = jax.lax.conv_general_dilated(h, w2.astype(jnp.float32), (1, 1), 'SAME',
                                      dimension_numbers=dn)
    h2 = bn(h2, gamma2, beta2)
    return jnp.transpose(jnp.maximum(h2 + x, 0.0), (0, 3, 1, 2))


if __name__ == "__main__":
    # Small shapes consistent with the module (in_channels = out_channels,
    # stride=1, downsample=None). W*C = 128 -> fully lane-dense activations.
    N, C, H, W = 2, 8, 16, 16

    key = jax.random.PRNGKey(0)
    kx, kw1, kw2, kg1, kb1, kg2, kb2 = jax.random.split(key, 7)

    x = jax.random.normal(kx, (N, C, H, W), dtype=jnp.float32)
    w1 = (0.05 * jax.random.normal(kw1, (3, 3, C, C))).astype(jnp.float32)  # conv1 (HWIO)
    w2 = (0.05 * jax.random.normal(kw2, (3, 3, C, C))).astype(jnp.float32)  # conv2 (HWIO)
    g1 = (1.0 + 0.1 * jax.random.normal(kg1, (C,))).astype(jnp.float32)     # bn1.weight
    b1 = (0.1 * jax.random.normal(kb1, (C,))).astype(jnp.float32)           # bn1.bias
    g2 = (1.0 + 0.1 * jax.random.normal(kg2, (C,))).astype(jnp.float32)     # bn2.weight
    b2 = (0.1 * jax.random.normal(kb2, (C,))).astype(jnp.float32)           # bn2.bias

    out = jax.block_until_ready(residual_block(x, w1, g1, b1, w2, g2, b2))
    ref = jax.block_until_ready(reference_forward(x, w1, g1, b1, w2, g2, b2))

    if not bool(jnp.allclose(out, ref, atol=1e-2, rtol=1e-2)):
        max_err = float(jnp.max(jnp.abs(out - ref)))
        raise AssertionError(
            f"Pallas kernel does not match reference (max abs err {max_err:.3e})")

    print("KERNEL_OK")
</pallas_src>

<mosaic_0001>
module attributes {stable_mosaic.version = 11 : i64} {
  func.func @residual_block_kernel(%arg0: memref<32x128xf32, #tpu.memory_space<vmem>>, %arg1: memref<2x32x32xf32, #tpu.memory_space<vmem>>, %arg2: memref<3x128x128xf32, #tpu.memory_space<vmem>>, %arg3: memref<3x128x128xf32, #tpu.memory_space<vmem>>, %arg4: memref<128x128xf32, #tpu.memory_space<vmem>>, %arg5: memref<1x128xf32, #tpu.memory_space<vmem>>, %arg6: memref<1x128xf32, #tpu.memory_space<vmem>>, %arg7: memref<1x128xf32, #tpu.memory_space<vmem>>, %arg8: memref<1x128xf32, #tpu.memory_space<vmem>>, %arg9: memref<32x128xf32, #tpu.memory_space<vmem>>) attributes {dimension_semantics = [], scalar_prefetch = 0 : i64, scratch_operands = 0 : i64, tpu.core_type = #tpu.core_type<tc>} {
    %c0 = arith.constant 0 : index
    %c0_0 = arith.constant 0 : index
    %0 = vector.load %arg0[%c0, %c0_0] : memref<32x128xf32, #tpu.memory_space<vmem>>, vector<32x128xf32>
    %c0_1 = arith.constant 0 : index
    %c0_2 = arith.constant 0 : index
    %c0_3 = arith.constant 0 : index
    %1 = vector.load %arg1[%c0_1, %c0_2, %c0_3] : memref<2x32x32xf32, #tpu.memory_space<vmem>>, vector<1x32x32xf32>
    %2 = vector.shape_cast %1 : vector<1x32x32xf32> to vector<32x32xf32>
    %c1 = arith.constant 1 : index
    %c0_4 = arith.constant 0 : index
    %c0_5 = arith.constant 0 : index
    %3 = vector.load %arg1[%c1, %c0_4, %c0_5] : memref<2x32x32xf32, #tpu.memory_space<vmem>>, vector<1x32x32xf32>
    %4 = vector.shape_cast %3 : vector<1x32x32xf32> to vector<32x32xf32>
    %c0_6 = arith.constant 0 : index
    %c0_7 = arith.constant 0 : index
    %5 = vector.load %arg4[%c0_6, %c0_7] : memref<128x128xf32, #tpu.memory_space<vmem>>, vector<128x128xf32>
    %cst = arith.constant dense<0.000000e+00> : vector<32x128xf32>
    %6 = tpu.matmul %2, %0, %cst {dimension_numbers = #tpu.dot_dimension_numbers<[1], [0], [0], [1], [0, 0, 1, 1], [], []>} : vector<32x32xf32>, vector<32x128xf32>, vector<32x128xf32> -> vector<32x128xf32>
    %cst_8 = arith.constant dense<0.000000e+00> : vector<32x128xf32>
    %7 = tpu.matmul %4, %0, %cst_8 {dimension_numbers = #tpu.dot_dimension_numbers<[1], [0], [0], [1], [0, 0, 1, 1], [], []>} : vector<32x32xf32>, vector<32x128xf32>, vector<32x128xf32> -> vector<32x128xf32>
    %c0_9 = arith.constant 0 : index
    %c0_10 = arith.constant 0 : index
    %c0_11 = arith.constant 0 : index
    %8 = vector.load %arg2[%c0_9, %c0_10, %c0_11] : memref<3x128x128xf32, #tpu.memory_space<vmem>>, vector<1x128x128xf32>
    %9 = vector.shape_cast %8 : vector<1x128x128xf32> to vector<128x128xf32>
    %cst_12 = arith.constant dense<0.000000e+00> : vector<32x128xf32>
    %10 = tpu.matmul %6, %9, %cst_12 {dimension_numbers = #tpu.dot_dimension_numbers<[1], [0], [0], [1], [0, 0, 1, 1], [], []>} : vector<32x128xf32>, vector<128x128xf32>, vector<32x128xf32> -> vector<32x128xf32>
    %c1_13 = arith.constant 1 : index
    %c0_14 = arith.constant 0 : index
    %c0_15 = arith.constant 0 : index
    %11 = vector.load %arg2[%c1_13, %c0_14, %c0_15] : memref<3x128x128xf32, #tpu.memory_space<vmem>>, vector<1x128x128xf32>
    %12 = vector.shape_cast %11 : vector<1x128x128xf32> to vector<128x128xf32>
    %cst_16 = arith.constant dense<0.000000e+00> : vector<32x128xf32>
    %13 = tpu.matmul %0, %12, %cst_16 {dimension_numbers = #tpu.dot_dimension_numbers<[1], [0], [0], [1], [0, 0, 1, 1], [], []>} : vector<32x128xf32>, vector<128x128xf32>, vector<32x128xf32> -> vector<32x128xf32>
    %14 = arith.addf %10, %13 : vector<32x128xf32>
    %c2 = arith.constant 2 : index
    %c0_17 = arith.constant 0 : index
    %c0_18 = arith.constant 0 : index
    %15 = vector.load %arg2[%c2, %c0_17, %c0_18] : memref<3x128x128xf32, #tpu.memory_space<vmem>>, vector<1x128x128xf32>
    %16 = vector.shape_cast %15 : vector<1x128x128xf32> to vector<128x128xf32>
    %cst_19 = arith.constant dense<0.000000e+00> : vector<32x128xf32>
    %17 = tpu.matmul %7, %16, %cst_19 {dimension_numbers = #tpu.dot_dimension_numbers<[1], [0], [0], [1], [0, 0, 1, 1], [], []>} : vector<32x128xf32>, vector<128x128xf32>, vector<32x128xf32> -> vector<32x128xf32>
    %18 = arith.addf %14, %17 : vector<32x128xf32>
    %c0_20 = arith.constant 0 : index
    %c0_21 = arith.constant 0 : index
    %19 = vector.load %arg5[%c0_20, %c0_21] : memref<1x128xf32, #tpu.memory_space<vmem>>, vector<1x128xf32>
    %c0_22 = arith.constant 0 : index
    %c0_23 = arith.constant 0 : index
    %20 = vector.load %arg6[%c0_22, %c0_23] : memref<1x128xf32, #tpu.memory_space<vmem>>, vector<1x128xf32>
    %cst_24 = arith.constant dense<0.000000e+00> : vector<32x128xf32>
    %21 = tpu.matmul %18, %5, %cst_24 {dimension_numbers = #tpu.dot_dimension_numbers<[1], [0], [0], [1], [0, 0, 1, 1], [], []>} : vector<32x128xf32>, vector<128x128xf32>, vector<32x128xf32> -> vector<32x128xf32>
    %cst_25 = arith.constant dense<0.000000e+00> : vector<128xf32>
    %22 = vector.multi_reduction <add>, %21, %cst_25 [0] : vector<32x128xf32> to vector<128xf32>
    %23 = vector.shape_cast %22 : vector<128xf32> to vector<1x128xf32>
    %24 = arith.mulf %18, %18 : vector<32x128xf32>
    %cst_26 = arith.constant dense<0.000000e+00> : vector<32x128xf32>
    %25 = tpu.matmul %24, %5, %cst_26 {dimension_numbers = #tpu.dot_dimension_numbers<[1], [0], [0], [1], [0, 0, 1, 1], [], []>} : vector<32x128xf32>, vector<128x128xf32>, vector<32x128xf32> -> vector<32x128xf32>
    %cst_27 = arith.constant dense<0.000000e+00> : vector<128xf32>
    %26 = vector.multi_reduction <add>, %25, %cst_27 [0] : vector<32x128xf32> to vector<128xf32>
    %27 = vector.shape_cast %26 : vector<128xf32> to vector<1x128xf32>
    %cst_28 = arith.constant 0.001953125 : f32
    %28 = vector.broadcast %cst_28 : f32 to vector<1x128xf32>
    %29 = arith.mulf %23, %28 : vector<1x128xf32>
    %cst_29 = arith.constant 0.001953125 : f32
    %30 = vector.broadcast %cst_29 : f32 to vector<1x128xf32>
    %31 = arith.mulf %27, %30 : vector<1x128xf32>
    %32 = arith.mulf %29, %29 : vector<1x128xf32>
    %33 = arith.subf %31, %32 : vector<1x128xf32>
    %cst_30 = arith.constant 9.99999974E-6 : f32
    %34 = vector.broadcast %cst_30 : f32 to vector<1x128xf32>
    %35 = arith.addf %33, %34 : vector<1x128xf32>
    %36 = math.rsqrt %35 : vector<1x128xf32>
    %37 = vector.broadcast %29 : vector<1x128xf32> to vector<32x128xf32>
    %38 = arith.subf %18, %37 : vector<32x128xf32>
    %39 = arith.mulf %36, %19 : vector<1x128xf32>
    %40 = vector.broadcast %39 : vector<1x128xf32> to vector<32x128xf32>
    %41 = arith.mulf %38, %40 : vector<32x128xf32>
    %42 = vector.broadcast %20 : vector<1x128xf32> to vector<32x128xf32>
    %43 = arith.addf %41, %42 : vector<32x128xf32>
    %cst_31 = arith.constant 0.000000e+00 : f32
    %44 = vector.broadcast %cst_31 : f32 to vector<32x128xf32>
    %45 = arith.maximumf %43, %44 : vector<32x128xf32>
    %cst_32 = arith.constant dense<0.000000e+00> : vector<32x128xf32>
    %46 = tpu.matmul %2, %45, %cst_32 {dimension_numbers = #tpu.dot_dimension_numbers<[1], [0], [0], [1], [0, 0, 1, 1], [], []>} : vector<32x32xf32>, vector<32x128xf32>, vector<32x128xf32> -> vector<32x128xf32>
    %cst_33 = arith.constant dense<0.000000e+00> : vector<32x128xf32>
    %47 = tpu.matmul %4, %45, %cst_33 {dimension_numbers = #tpu.dot_dimension_numbers<[1], [0], [0], [1], [0, 0, 1, 1], [], []>} : vector<32x32xf32>, vector<32x128xf32>, vector<32x128xf32> -> vector<32x128xf32>
    %c0_34 = arith.constant 0 : index
    %c0_35 = arith.constant 0 : index
    %c0_36 = arith.constant 0 : index
    %48 = vector.load %arg3[%c0_34, %c0_35, %c0_36] : memref<3x128x128xf32, #tpu.memory_space<vmem>>, vector<1x128x128xf32>
    %49 = vector.shape_cast %48 : vector<1x128x128xf32> to vector<128x128xf32>
    %cst_37 = arith.constant dense<0.000000e+00> : vector<32x128xf32>
    %50 = tpu.matmul %46, %49, %cst_37 {dimension_numbers = #tpu.dot_dimension_numbers<[1], [0], [0], [1], [0, 0, 1, 1], [], []>} : vector<32x128xf32>, vector<128x128xf32>, vector<32x128xf32> -> vector<32x128xf32>
    %c1_38 = arith.constant 1 : index
    %c0_39 = arith.constant 0 : index
    %c0_40 = arith.constant 0 : index
    %51 = vector.load %arg3[%c1_38, %c0_39, %c0_40] : memref<3x128x128xf32, #tpu.memory_space<vmem>>, vector<1x128x128xf32>
    %52 = vector.shape_cast %51 : vector<1x128x128xf32> to vector<128x128xf32>
    %cst_41 = arith.constant dense<0.000000e+00> : vector<32x128xf32>
    %53 = tpu.matmul %45, %52, %cst_41 {dimension_numbers = #tpu.dot_dimension_numbers<[1], [0], [0], [1], [0, 0, 1, 1], [], []>} : vector<32x128xf32>, vector<128x128xf32>, vector<32x128xf32> -> vector<32x128xf32>
    %54 = arith.addf %50, %53 : vector<32x128xf32>
    %c2_42 = arith.constant 2 : index
    %c0_43 = arith.constant 0 : index
    %c0_44 = arith.constant 0 : index
    %55 = vector.load %arg3[%c2_42, %c0_43, %c0_44] : memref<3x128x128xf32, #tpu.memory_space<vmem>>, vector<1x128x128xf32>
    %56 = vector.shape_cast %55 : vector<1x128x128xf32> to vector<128x128xf32>
    %cst_45 = arith.constant dense<0.000000e+00> : vector<32x128xf32>
    %57 = tpu.matmul %47, %56, %cst_45 {dimension_numbers = #tpu.dot_dimension_numbers<[1], [0], [0], [1], [0, 0, 1, 1], [], []>} : vector<32x128xf32>, vector<128x128xf32>, vector<32x128xf32> -> vector<32x128xf32>
    %58 = arith.addf %54, %57 : vector<32x128xf32>
    %c0_46 = arith.constant 0 : index
    %c0_47 = arith.constant 0 : index
    %59 = vector.load %arg7[%c0_46, %c0_47] : memref<1x128xf32, #tpu.memory_space<vmem>>, vector<1x128xf32>
    %c0_48 = arith.constant 0 : index
    %c0_49 = arith.constant 0 : index
    %60 = vector.load %arg8[%c0_48, %c0_49] : memref<1x128xf32, #tpu.memory_space<vmem>>, vector<1x128xf32>
    %cst_50 = arith.constant dense<0.000000e+00> : vector<32x128xf32>
    %61 = tpu.matmul %58, %5, %cst_50 {dimension_numbers = #tpu.dot_dimension_numbers<[1], [0], [0], [1], [0, 0, 1, 1], [], []>} : vector<32x128xf32>, vector<128x128xf32>, vector<32x128xf32> -> vector<32x128xf32>
    %cst_51 = arith.constant dense<0.000000e+00> : vector<128xf32>
    %62 = vector.multi_reduction <add>, %61, %cst_51 [0] : vector<32x128xf32> to vector<128xf32>
    %63 = vector.shape_cast %62 : vector<128xf32> to vector<1x128xf32>
    %64 = arith.mulf %58, %58 : vector<32x128xf32>
    %cst_52 = arith.constant dense<0.000000e+00> : vector<32x128xf32>
    %65 = tpu.matmul %64, %5, %cst_52 {dimension_numbers = #tpu.dot_dimension_numbers<[1], [0], [0], [1], [0, 0, 1, 1], [], []>} : vector<32x128xf32>, vector<128x128xf32>, vector<32x128xf32> -> vector<32x128xf32>
    %cst_53 = arith.constant dense<0.000000e+00> : vector<128xf32>
    %66 = vector.multi_reduction <add>, %65, %cst_53 [0] : vector<32x128xf32> to vector<128xf32>
    %67 = vector.shape_cast %66 : vector<128xf32> to vector<1x128xf32>
    %cst_54 = arith.constant 0.001953125 : f32
    %68 = vector.broadcast %cst_54 : f32 to vector<1x128xf32>
    %69 = arith.mulf %63, %68 : vector<1x128xf32>
    %cst_55 = arith.constant 0.001953125 : f32
    %70 = vector.broadcast %cst_55 : f32 to vector<1x128xf32>
    %71 = arith.mulf %67, %70 : vector<1x128xf32>
    %72 = arith.mulf %69, %69 : vector<1x128xf32>
    %73 = arith.subf %71, %72 : vector<1x128xf32>
    %cst_56 = arith.constant 9.99999974E-6 : f32
    %74 = vector.broadcast %cst_56 : f32 to vector<1x128xf32>
    %75 = arith.addf %73, %74 : vector<1x128xf32>
    %76 = math.rsqrt %75 : vector<1x128xf32>
    %77 = vector.broadcast %69 : vector<1x128xf32> to vector<32x128xf32>
    %78 = arith.subf %58, %77 : vector<32x128xf32>
    %79 = arith.mulf %76, %59 : vector<1x128xf32>
    %80 = vector.broadcast %79 : vector<1x128xf32> to vector<32x128xf32>
    %81 = arith.mulf %78, %80 : vector<32x128xf32>
    %82 = vector.broadcast %60 : vector<1x128xf32> to vector<32x128xf32>
    %83 = arith.addf %81, %82 : vector<32x128xf32>
    %84 = arith.addf %83, %0 : vector<32x128xf32>
    %cst_57 = arith.constant 0.000000e+00 : f32
    %85 = vector.broadcast %cst_57 : f32 to vector<32x128xf32>
    %86 = arith.maximumf %84, %85 : vector<32x128xf32>
    %c0_58 = arith.constant 0 : index
    %c0_59 = arith.constant 0 : index
    %87 = vector.load %arg9[%c0_58, %c0_59] : memref<32x128xf32, #tpu.memory_space<vmem>>, vector<32x128xf32>
    tpu.vector_store %arg9[%c0_58, %c0_59], %86 {strides = array<i32>} : memref<32x128xf32, #tpu.memory_space<vmem>>, vector<32x128xf32>,
    return
  }
}

</mosaic_0001>

<llo_original>
// kernel: tpu_custom_call.1
$region0: #{tpu_custom_call.1}
  #allocation0 [shape = 'u32[]', space=smem, size = 0x4, offset = 0x4, fixed_abs, tag = 'smem constant byte address 0x4 - core index']
  #allocation1 [shape = 'u32[144,128]{1,0:T(1,128)}', space=vmem, size = 0x12000, scoped, tag = 'internal scratch']
  %s0 = inlined_call_operand.hbm [shape: f32[32,128], index: 0, kind: input, shape index: {}]
  %s1 = inlined_call_operand.hbm [shape: f32[2,32,32], index: 1, kind: input, shape index: {}]
  %s2 = inlined_call_operand.hbm [shape: f32[3,128,128], index: 2, kind: input, shape index: {}]
  %s3 = inlined_call_operand.hbm [shape: f32[3,128,128], index: 3, kind: input, shape index: {}]
  %s4 = inlined_call_operand.hbm [shape: f32[128,128], index: 4, kind: input, shape index: {}]
  %s5 = inlined_call_operand.vmem [shape: f32[1,128], index: 5, kind: input, shape index: {}]
  %s6 = inlined_call_operand.vmem [shape: f32[1,128], index: 6, kind: input, shape index: {}]
  %s7 = inlined_call_operand.vmem [shape: f32[1,128], index: 7, kind: input, shape index: {}]
  %s8 = inlined_call_operand.vmem [shape: f32[1,128], index: 8, kind: input, shape index: {}]
  %s9 = inlined_call_operand.hbm [shape: f32[32,128], index: 9, kind: output, shape index: {}]
  %s10 = sld [smem:[#allocation0]]
  $region66: #{tpu_custom_call.1} parent=0
    _
  %s12 = ssub.s32 1, %s10
  %s13 = scalar_select 0, %s12, %s10
  $region1: #{tpu_custom_call.1} parent=0
    #allocation2 [shape = 'u8[16384]{0}', space=vmem, size = 0x4000, scoped, tag = 'input window, operand 0, single buffered']
    #allocation3 [shape = 's32[1]{0}', space=sflag, size = 0x4, scoped, tag = 'scoped memory for tpu_custom_call.1']
    #allocation4 [shape = 's32[1]{0}', space=sflag, size = 0x4, scoped, tag = 'scoped memory for tpu_custom_call.1']
    #allocation5 [shape = 'u8[32768]{0}', space=vmem, size = 0x8000, scoped, tag = 'input window, operand 1, single buffered']
    #allocation6 [shape = 's32[1]{0}', space=sflag, size = 0x4, scoped, tag = 'scoped memory for tpu_custom_call.1']
    #allocation7 [shape = 'u8[196608]{0}', space=vmem, size = 0x30000, scoped, tag = 'input window, operand 2, single buffered']
    #allocation8 [shape = 'u8[196608]{0}', space=vmem, size = 0x30000, scoped, tag = 'input window, operand 3, single buffered']
    #allocation9 [shape = 's32[1]{0}', space=sflag, size = 0x4, scoped, tag = 'scoped memory for tpu_custom_call.1']
    #allocation10 [shape = 'u8[65536]{0}', space=vmem, size = 0x10000, scoped, tag = 'input window, operand 4, single buffered']
    #allocation11 [shape = 'u8[16384]{0}', space=vmem, size = 0x4000, scoped, tag = 'output window, operand 0, single buffered']
    %14 = vsyncpa [#allocation3], 0
    %15 = vsyncpa [#allocation6], 0
    %16 = vsyncpa [#allocation9], 0
    %17 = vsyncpa [#allocation4], 0
    // Predicated region
    $region2: #{tpu_custom_call.1} parent=1 // pred_check
      _
    $region3: #{tpu_custom_call.1} parent=1 // pred_check_branch
      %19 = sbr.rel (0) target = $region5
    $region4: #{tpu_custom_call.1} parent=1 // pred_region
      %s21 = ssub.s32 512, 512
      %22 = vsyncadd [#allocation3], %s21
      %s23 = sshll.u32 [#allocation2], 4
      %s24 = int_to_ptr.vmem [resolvable:$true] %s23
      %29 = dma.hbm_to_vmem [thread:$0]  %s0, 512, %s24, [#allocation3], 128, 128, 8
    $region5: #{tpu_custom_call.1} parent=1 // pred_fallthru
      _
    // Predicated region
    $region6: #{tpu_custom_call.1} parent=1 // pred_check
      _
    $region7: #{tpu_custom_call.1} parent=1 // pred_check_branch
      %31 = sbr.rel (0) target = $region9
    $region8: #{tpu_custom_call.1} parent=1 // pred_region
      %s33 = ssub.s32 1024, 1024
      %34 = vsyncadd [#allocation6], %s33
      %s35 = sshll.u32 [#allocation5], 4
      %s36 = int_to_ptr.vmem [resolvable:$true] %s35
      %41 = dma.hbm_to_vmem [thread:$0]  %s1, 1024, %s36, [#allocation6], 128, 128, 8
    $region9: #{tpu_custom_call.1} parent=1 // pred_fallthru
      _
    // Predicated region
    $region10: #{tpu_custom_call.1} parent=1 // pred_check
      _
    $region11: #{tpu_custom_call.1} parent=1 // pred_check_branch
      %43 = sbr.rel (0) target = $region13
    $region12: #{tpu_custom_call.1} parent=1 // pred_region
      %s45 = ssub.s32 6144, 6144
      %46 = vsyncadd [#allocation6], %s45
      %s47 = sshll.u32 [#allocation7], 4
      %s48 = int_to_ptr.vmem [resolvable:$true] %s47
      %53 = dma.hbm_to_vmem [thread:$0]  %s2, 6144, %s48, [#allocation6], 128, 128, 8
    $region13: #{tpu_custom_call.1} parent=1 // pred_fallthru
      _
    // Predicated region
    $region14: #{tpu_custom_call.1} parent=1 // pred_check
      _
    $region15: #{tpu_custom_call.1} parent=1 // pred_check_branch
      %55 = sbr.rel (0) target = $region17
    $region16: #{tpu_custom_call.1} parent=1 // pred_region
      %s57 = ssub.s32 6144, 6144
      %58 = vsyncadd [#allocation9], %s57
      %s59 = sshll.u32 [#allocation8], 4
      %s60 = int_to_ptr.vmem [resolvable:$true] %s59
      %65 = dma.hbm_to_vmem [thread:$0]  %s3, 6144, %s60, [#allocation9], 128, 128, 8
    $region17: #{tpu_custom_call.1} parent=1 // pred_fallthru
      _
    // Predicated region
    $region18: #{tpu_custom_call.1} parent=1 // pred_check
      _
    $region19: #{tpu_custom_call.1} parent=1 // pred_check_branch
      %67 = sbr.rel (0) target = $region21
    $region20: #{tpu_custom_call.1} parent=1 // pred_region
      %s69 = ssub.s32 2048, 2048
      %70 = vsyncadd [#allocation9], %s69
      %s71 = sshll.u32 [#allocation10], 4
      %s72 = int_to_ptr.vmem [resolvable:$true] %s71
      %77 = dma.hbm_to_vmem [thread:$0]  %s4, 2048, %s72, [#allocation9], 128, 128, 8
    $region21: #{tpu_custom_call.1} parent=1 // pred_fallthru
      _
    // Predicated region
    $region22: #{tpu_custom_call.1} parent=1 // pred_check
      _
    $region23: #{tpu_custom_call.1} parent=1 // pred_check_branch
      %79 = sbr.rel (0) target = $region25
    $region24: #{tpu_custom_call.1} parent=1 // pred_region
      _
    $region25: #{tpu_custom_call.1} parent=1 // pred_fallthru
      _
    // Predicated region
    $region26: #{tpu_custom_call.1} parent=1 // pred_check
      _
    $region27: #{tpu_custom_call.1} parent=1 // pred_check_branch
      %81 = sbr.rel (0) target = $region29
    $region28: #{tpu_custom_call.1} parent=1 // pred_region
      _
    $region29: #{tpu_custom_call.1} parent=1 // pred_fallthru
      _
    // Predicated region
    $region30: #{tpu_custom_call.1} parent=1 // pred_check
      _
    $region31: #{tpu_custom_call.1} parent=1 // pred_check_branch
      %83 = sbr.rel (0) target = $region33
    $region32: #{tpu_custom_call.1} parent=1 // pred_region
      _
    $region33: #{tpu_custom_call.1} parent=1 // pred_fallthru
      _
    // Predicated region
    $region34: #{tpu_custom_call.1} parent=1 // pred_check
      _
    $region35: #{tpu_custom_call.1} parent=1 // pred_check_branch
      %85 = sbr.rel (0) target = $region37
    $region36: #{tpu_custom_call.1} parent=1 // pred_region
      _
    $region37: #{tpu_custom_call.1} parent=1 // pred_fallthru
      _
    // Predicated region
    $region38: #{tpu_custom_call.1} parent=1 // pred_check
      _
    $region39: #{tpu_custom_call.1} parent=1 // pred_check_branch
      %87 = sbr.rel (0) target = $region41
    $region40: #{tpu_custom_call.1} parent=1 // pred_region
      %88 = dma.done [#allocation3], 512
    $region41: #{tpu_custom_call.1} parent=1 // pred_fallthru
      _
    // Predicated region
    $region42: #{tpu_custom_call.1} parent=1 // pred_check
      _
    $region43: #{tpu_custom_call.1} parent=1 // pred_check_branch
      %90 = sbr.rel (0) target = $region45
    $region44: #{tpu_custom_call.1} parent=1 // pred_region
      %91 = dma.done [#allocation6], 1024
    $region45: #{tpu_custom_call.1} parent=1 // pred_fallthru
      _
    // Predicated region
    $region46: #{tpu_custom_call.1} parent=1 // pred_check
      _
    $region47: #{tpu_custom_call.1} parent=1 // pred_check_branch
      %93 = sbr.rel (0) target = $region49
    $region48: #{tpu_custom_call.1} parent=1 // pred_region
      %94 = dma.done [#allocation6], 6144
    $region49: #{tpu_custom_call.1} parent=1 // pred_fallthru
      _
    // Predicated region
    $region50: #{tpu_custom_call.1} parent=1 // pred_check
      _
    $region51: #{tpu_custom_call.1} parent=1 // pred_check_branch
      %96 = sbr.rel (0) target = $region53
    $region52: #{tpu_custom_call.1} parent=1 // pred_region
      %97 = dma.done [#allocation9], 6144
    $region53: #{tpu_custom_call.1} parent=1 // pred_fallthru
      _
    // Predicated region
    $region54: #{tpu_custom_call.1} parent=1 // pred_check
      _
    $region55: #{tpu_custom_call.1} parent=1 // pred_check_branch
      %99 = sbr.rel (0) target = $region57
    $region56: #{tpu_custom_call.1} parent=1 // pred_region
      %100 = dma.done [#allocation9], 2048
    $region57: #{tpu_custom_call.1} parent=1 // pred_fallthru
      _
    %v101 = vld [vmem:[#allocation2] sm:$0xff]
    %v102 = vld [vmem:[#allocation2 + $0x8] sm:$0xff]
    %v103 = vld [vmem:[#allocation2 + $0x10] sm:$0xff]
    %v104 = vld [vmem:[#allocation2 + $0x18] sm:$0xff]
    %v105 = vld [vmem:[#allocation5] sm:$0xff]
    %v106 = vld [vmem:[#allocation5 + $0x8] sm:$0xff]
    %v107 = vld [vmem:[#allocation5 + $0x10] sm:$0xff]
    %v108 = vld [vmem:[#allocation5 + $0x18] sm:$0xff]
    %s109 = scalar_lea.vmem [#allocation5], 32
    %v110 = vld [vmem:[%s109] sm:$0xff]
    %v111 = vld [vmem:[%s109 + $0x8] sm:$0xff]
    %v112 = vld [vmem:[%s109 + $0x10] sm:$0xff]
    %v113 = vld [vmem:[%s109 + $0x18] sm:$0xff]
    %v114 = vld [vmem:[#allocation10] sm:$0xff]
    %v115 = vld [vmem:[#allocation10 + $0x8] sm:$0xff]
    %v116 = vld [vmem:[#allocation10 + $0x10] sm:$0xff]
    %v117 = vld [vmem:[#allocation10 + $0x18] sm:$0xff]
    %v118 = vld [vmem:[#allocation10 + $0x20] sm:$0xff]
    %v119 = vld [vmem:[#allocation10 + $0x28] sm:$0xff]
    %v120 = vld [vmem:[#allocation10 + $0x30] sm:$0xff]
    %v121 = vld [vmem:[#allocation10 + $0x38] sm:$0xff]
    %v122 = vld [vmem:[#allocation10 + $0x40] sm:$0xff]
    %v123 = vld [vmem:[#allocation10 + $0x48] sm:$0xff]
    %v124 = vld [vmem:[#allocation10 + $0x50] sm:$0xff]
    %v125 = vld [vmem:[#allocation10 + $0x58] sm:$0xff]
    %v126 = vld [vmem:[#allocation10 + $0x60] sm:$0xff]
    %v127 = vld [vmem:[#allocation10 + $0x68] sm:$0xff]
    %v128 = vld [vmem:[#allocation10 + $0x70] sm:$0xff]
    %v129 = vld [vmem:[#allocation10 + $0x78] sm:$0xff]
    %vm130 = vcmask 261120
    %v132 = vsel %vm130, %v105, 0
    %v135 = vsel %vm130, %v106, 0
    %v138 = vsel %vm130, %v107, 0
    %v141 = vsel %vm130, %v108, 0
    %143 = vmatprep.subr.mxu0 0.0
    %144 = vmatpush1.msra.mxu0 0.0
    %145 = vmatprep.subr.mxu0 0.0
    %146 = vmatpush1.msra.mxu0 0.0
    %147 = vmatprep.subr.mxu0 0.0
    %148 = vmatpush1.msra.mxu0 0.0
    %149 = vmatprep.subr.mxu0 0.0
    %150 = vmatpush1.msra.mxu0 0.0
    %151 = vmatprep.subr.mxu0 0.0
    %152 = vmatpush1.msra.mxu0 0.0
    %153 = vmatprep.subr.mxu0 0.0
    %154 = vmatpush1.msra.mxu0 0.0
    %155 = vmatprep.subr.mxu0 0.0
    %156 = vmatpush1.msra.mxu0 0.0
    %157 = vmatprep.subr.mxu0 0.0
    %158 = vmatpush1.msra.mxu0 0.0
    %159 = vmatprep.subr.mxu0 0.0
    %160 = vmatpush1.msra.mxu0 0.0
    %161 = vmatprep.subr.mxu0 0.0
    %162 = vmatpush1.msra.mxu0 0.0
    %163 = vmatprep.subr.mxu0 0.0
    %164 = vmatpush1.msra.mxu0 0.0
    %165 = vmatprep.subr.mxu0 0.0
    %166 = vmatpush1.msra.mxu0 0.0
    %167 = vmatprep.subr.mxu0 0.0
    %168 = vmatpush1.msra.mxu0 %v104
    %169 = vmatprep.subr.mxu0 0.0
    %170 = vmatpush1.msra.mxu0 %v103
    %171 = vmatprep.subr.mxu0 0.0
    %172 = vmatpush1.msra.mxu0 %v102
    %173 = vmatprep.subr.mxu0 0.0
    %174 = vmatpush1.msra.mxu0 %v101
    %175 = vmatprep.subr.mxu0 0.0
    %176 = vmatpush2.msra.mxu0 0.0
    %177 = vmatprep.subr.mxu0 0.0
    %178 = vmatpush2.msra.mxu0 0.0
    %179 = vmatprep.subr.mxu0 0.0
    %180 = vmatpush2.msra.mxu0 0.0
    %181 = vmatprep.subr.mxu0 0.0
    %182 = vmatpush2.msra.mxu0 0.0
    %183 = vmatprep.subr.mxu0 0.0
    %184 = vmatpush2.msra.mxu0 0.0
    %185 = vmatprep.subr.mxu0 0.0
    %186 = vmatpush2.msra.mxu0 0.0
    %187 = vmatprep.subr.mxu0 0.0
    %188 = vmatpush2.msra.mxu0 0.0
    %189 = vmatprep.subr.mxu0 0.0
    %190 = vmatpush2.msra.mxu0 0.0
    %191 = vmatprep.subr.mxu0 0.0
    %192 = vmatpush2.msra.mxu0 0.0
    %193 = vmatprep.subr.mxu0 0.0
    %194 = vmatpush2.msra.mxu0 0.0
    %195 = vmatprep.subr.mxu0 0.0
    %196 = vmatpush2.msra.mxu0 0.0
    %197 = vmatprep.subr.mxu0 0.0
    %198 = vmatpush2.msra.mxu0 0.0
    %199 = vmatprep.subr.mxu0 0.0
    %200 = vmatpush2.msra.mxu0 0.0
    %201 = vmatprep.subr.mxu0 0.0
    %202 = vmatpush2.msra.mxu0 0.0
    %203 = vmatprep.subr.mxu0 0.0
    %204 = vmatpush2.msra.mxu0 0.0
    %205 = vmatprep.subr.mxu0 0.0
    %206 = vmatpush2.msra.mxu0 0.0
    %207 = vmatprep.mubr.f32.mxu0 0.0
    %208 = vmatmul.mubr.f32.gmra.mxu0 %v132
    %v209 = vpop.f32.mrf.mxu0
    %v210 = vadd.f32 0.0, %v209
    %v211 = vpop.f32.mrf.mxu0
    %212 = vmatprep.mubr.f32.mxu0 0.0
    %213 = vmatmul.mubr.f32.gmra.mxu0 %v135
    %v214 = vpop.f32.mrf.mxu0
    %v215 = vadd.f32 0.0, %v214
    %v216 = vpop.f32.mrf.mxu0
    %217 = vmatprep.mubr.f32.mxu0 0.0
    %218 = vmatmul.mubr.f32.gmra.mxu0 %v138
    %v219 = vpop.f32.mrf.mxu0
    %v220 = vadd.f32 0.0, %v219
    %v221 = vpop.f32.mrf.mxu0
    %222 = vmatprep.mubr.f32.mxu0 0.0
    %223 = vmatmul.mubr.f32.gmra.mxu0 %v141
    %v224 = vpop.f32.mrf.mxu0
    %v225 = vadd.f32 0.0, %v224
    %v226 = vpop.f32.mrf.mxu0
    %227 = vdwg.mxu0
    %v229 = vsel %vm130, %v110, 0
    %v232 = vsel %vm130, %v111, 0
    %v235 = vsel %vm130, %v112, 0
    %v238 = vsel %vm130, %v113, 0
    %240 = vmatprep.subr.mxu0 0.0
    %241 = vmatpush1.msra.mxu0 0.0
    %242 = vmatprep.subr.mxu0 0.0
    %243 = vmatpush1.msra.mxu0 0.0
    %244 = vmatprep.subr.mxu0 0.0
    %245 = vmatpush1.msra.mxu0 0.0
    %246 = vmatprep.subr.mxu0 0.0
    %247 = vmatpush1.msra.mxu0 0.0
    %248 = vmatprep.subr.mxu0 0.0
    %249 = vmatpush1.msra.mxu0 0.0
    %250 = vmatprep.subr.mxu0 0.0
    %251 = vmatpush1.msra.mxu0 0.0
    %252 = vmatprep.subr.mxu0 0.0
    %253 = vmatpush1.msra.mxu0 0.0
    %254 = vmatprep.subr.mxu0 0.0
    %255 = vmatpush1.msra.mxu0 0.0
    %256 = vmatprep.subr.mxu0 0.0
    %257 = vmatpush1.msra.mxu0 0.0
    %258 = vmatprep.subr.mxu0 0.0
    %259 = vmatpush1.msra.mxu0 0.0
    %260 = vmatprep.subr.mxu0 0.0
    %261 = vmatpush1.msra.mxu0 0.0
    %262 = vmatprep.subr.mxu0 0.0
    %263 = vmatpush1.msra.mxu0 0.0
    %264 = vmatprep.subr.mxu0 0.0
    %265 = vmatpush1.msra.mxu0 %v104
    %266 = vmatprep.subr.mxu0 0.0
    %267 = vmatpush1.msra.mxu0 %v103
    %268 = vmatprep.subr.mxu0 0.0
    %269 = vmatpush1.msra.mxu0 %v102
    %270 = vmatprep.subr.mxu0 0.0
    %271 = vmatpush1.msra.mxu0 %v101
    %272 = vmatprep.subr.mxu0 0.0
    %273 = vmatpush2.msra.mxu0 0.0
    %274 = vmatprep.subr.mxu0 0.0
    %275 = vmatpush2.msra.mxu0 0.0
    %276 = vmatprep.subr.mxu0 0.0
    %277 = vmatpush2.msra.mxu0 0.0
    %278 = vmatprep.subr.mxu0 0.0
    %279 = vmatpush2.msra.mxu0 0.0
    %280 = vmatprep.subr.mxu0 0.0
    %281 = vmatpush2.msra.mxu0 0.0
    %282 = vmatprep.subr.mxu0 0.0
    %283 = vmatpush2.msra.mxu0 0.0
    %284 = vmatprep.subr.mxu0 0.0
    %285 = vmatpush2.msra.mxu0 0.0
    %286 = vmatprep.subr.mxu0 0.0
    %287 = vmatpush2.msra.mxu0 0.0
    %288 = vmatprep.subr.mxu0 0.0
    %289 = vmatpush2.msra.mxu0 0.0
    %290 = vmatprep.subr.mxu0 0.0
    %291 = vmatpush2.msra.mxu0 0.0
    %292 = vmatprep.subr.mxu0 0.0
    %293 = vmatpush2.msra.mxu0 0.0
    %294 = vmatprep.subr.mxu0 0.0
    %295 = vmatpush2.msra.mxu0 0.0
    %296 = vmatprep.subr.mxu0 0.0
    %297 = vmatpush2.msra.mxu0 0.0
    %298 = vmatprep.subr.mxu0 0.0
    %299 = vmatpush2.msra.mxu0 0.0
    %300 = vmatprep.subr.mxu0 0.0
    %301 = vmatpush2.msra.mxu0 0.0
    %302 = vmatprep.subr.mxu0 0.0
    %303 = vmatpush2.msra.mxu0 0.0
    %304 = vmatprep.mubr.f32.mxu0 0.0
    %305 = vmatmul.mubr.f32.gmra.mxu0 %v229
    %v306 = vpop.f32.mrf.mxu0
    %v307 = vadd.f32 0.0, %v306
    %v308 = vpop.f32.mrf.mxu0
    %309 = vmatprep.mubr.f32.mxu0 0.0
    %310 = vmatmul.mubr.f32.gmra.mxu0 %v232
    %v311 = vpop.f32.mrf.mxu0
    %v312 = vadd.f32 0.0, %v311
    %v313 = vpop.f32.mrf.mxu0
    %314 = vmatprep.mubr.f32.mxu0 0.0
    %315 = vmatmul.mubr.f32.gmra.mxu0 %v235
    %v316 = vpop.f32.mrf.mxu0
    %v317 = vadd.f32 0.0, %v316
    %v318 = vpop.f32.mrf.mxu0
    %319 = vmatprep.mubr.f32.mxu0 0.0
    %320 = vmatmul.mubr.f32.gmra.mxu0 %v238
    %v321 = vpop.f32.mrf.mxu0
    %v322 = vadd.f32 0.0, %v321
    %v323 = vpop.f32.mrf.mxu0
    %324 = vdwg.mxu0
    %v325 = vld [vmem:[#allocation7] sm:$0xff]
    %v326 = vld [vmem:[#allocation7 + $0x8] sm:$0xff]
    %v327 = vld [vmem:[#allocation7 + $0x10] sm:$0xff]
    %v328 = vld [vmem:[#allocation7 + $0x18] sm:$0xff]
    %v329 = vld [vmem:[#allocation7 + $0x20] sm:$0xff]
    %v330 = vld [vmem:[#allocation7 + $0x28] sm:$0xff]
    %v331 = vld [vmem:[#allocation7 + $0x30] sm:$0xff]
    %v332 = vld [vmem:[#allocation7 + $0x38] sm:$0xff]
    %v333 = vld [vmem:[#allocation7 + $0x40] sm:$0xff]
    %v334 = vld [vmem:[#allocation7 + $0x48] sm:$0xff]
    %v335 = vld [vmem:[#allocation7 + $0x50] sm:$0xff]
    %v336 = vld [vmem:[#allocation7 + $0x58] sm:$0xff]
    %v337 = vld [vmem:[#allocation7 + $0x60] sm:$0xff]
    %v338 = vld [vmem:[#allocation7 + $0x68] sm:$0xff]
    %v339 = vld [vmem:[#allocation7 + $0x70] sm:$0xff]
    %v340 = vld [vmem:[#allocation7 + $0x78] sm:$0xff]
    %s341 = scalar_lea.vmem [#allocation7], 128
    %v342 = vld [vmem:[%s341] sm:$0xff]
    %v343 = vld [vmem:[%s341 + $0x8] sm:$0xff]
    %v344 = vld [vmem:[%s341 + $0x10] sm:$0xff]
    %v345 = vld [vmem:[%s341 + $0x18] sm:$0xff]
    %v346 = vld [vmem:[%s341 + $0x20] sm:$0xff]
    %v347 = vld [vmem:[%s341 + $0x28] sm:$0xff]
    %v348 = vld [vmem:[%s341 + $0x30] sm:$0xff]
    %v349 = vld [vmem:[%s341 + $0x38] sm:$0xff]
    %v350 = vld [vmem:[%s341 + $0x40] sm:$0xff]
    %v351 = vld [vmem:[%s341 + $0x48] sm:$0xff]
    %v352 = vld [vmem:[%s341 + $0x50] sm:$0xff]
    %v353 = vld [vmem:[%s341 + $0x58] sm:$0xff]
    %v354 = vld [vmem:[%s341 + $0x60] sm:$0xff]
    %v355 = vld [vmem:[%s341 + $0x68] sm:$0xff]
    %v356 = vld [vmem:[%s341 + $0x70] sm:$0xff]
    %v357 = vld [vmem:[%s341 + $0x78] sm:$0xff]
    %358 = vmatprep.subr.mxu0 0.0
    %359 = vmatpush1.msra.mxu0 %v357
    %360 = vmatprep.subr.mxu0 0.0
    %361 = vmatpush1.msra.mxu0 %v356
    %362 = vmatprep.subr.mxu0 0.0
    %363 = vmatpush1.msra.mxu0 %v355
    %364 = vmatprep.subr.mxu0 0.0
    %365 = vmatpush1.msra.mxu0 %v354
    %366 = vmatprep.subr.mxu0 0.0
    %367 = vmatpush1.msra.mxu0 %v353
    %368 = vmatprep.subr.mxu0 0.0
    %369 = vmatpush1.msra.mxu0 %v352
    %370 = vmatprep.subr.mxu0 0.0
    %371 = vmatpush1.msra.mxu0 %v351
    %372 = vmatprep.subr.mxu0 0.0
    %373 = vmatpush1.msra.mxu0 %v350
    %374 = vmatprep.subr.mxu0 0.0
    %375 = vmatpush1.msra.mxu0 %v349
    %376 = vmatprep.subr.mxu0 0.0
    %377 = vmatpush1.msra.mxu0 %v348
    %378 = vmatprep.subr.mxu0 0.0
    %379 = vmatpush1.msra.mxu0 %v347
    %380 = vmatprep.subr.mxu0 0.0
    %381 = vmatpush1.msra.mxu0 %v346
    %382 = vmatprep.subr.mxu0 0.0
    %383 = vmatpush1.msra.mxu0 %v345
    %384 = vmatprep.subr.mxu0 0.0
    %385 = vmatpush1.msra.mxu0 %v344
    %386 = vmatprep.subr.mxu0 0.0
    %387 = vmatpush1.msra.mxu0 %v343
    %388 = vmatprep.subr.mxu0 0.0
    %389 = vmatpush1.msra.mxu0 %v342
    %390 = vmatprep.subr.mxu0 0.0
    %391 = vmatpush2.msra.mxu0 0.0
    %392 = vmatprep.subr.mxu0 0.0
    %393 = vmatpush2.msra.mxu0 0.0
    %394 = vmatprep.subr.mxu0 0.0
    %395 = vmatpush2.msra.mxu0 0.0
    %396 = vmatprep.subr.mxu0 0.0
    %397 = vmatpush2.msra.mxu0 0.0
    %398 = vmatprep.subr.mxu0 0.0
    %399 = vmatpush2.msra.mxu0 0.0
    %400 = vmatprep.subr.mxu0 0.0
    %401 = vmatpush2.msra.mxu0 0.0
    %402 = vmatprep.subr.mxu0 0.0
    %403 = vmatpush2.msra.mxu0 0.0
    %404 = vmatprep.subr.mxu0 0.0
    %405 = vmatpush2.msra.mxu0 0.0
    %406 = vmatprep.subr.mxu0 0.0
    %407 = vmatpush2.msra.mxu0 0.0
    %408 = vmatprep.subr.mxu0 0.0
    %409 = vmatpush2.msra.mxu0 0.0
    %410 = vmatprep.subr.mxu0 0.0
    %411 = vmatpush2.msra.mxu0 0.0
    %412 = vmatprep.subr.mxu0 0.0
    %413 = vmatpush2.msra.mxu0 0.0
    %414 = vmatprep.subr.mxu0 0.0
    %415 = vmatpush2.msra.mxu0 0.0
    %416 = vmatprep.subr.mxu0 0.0
    %417 = vmatpush2.msra.mxu0 0.0
    %418 = vmatprep.subr.mxu0 0.0
    %419 = vmatpush2.msra.mxu0 0.0
    %420 = vmatprep.subr.mxu0 0.0
    %421 = vmatpush2.msra.mxu0 0.0
    %422 = vmatprep.mubr.f32.mxu0 0.0
    %423 = vmatmul.mubr.f32.gmra.mxu0 %v101
    %v424 = vpop.f32.mrf.mxu0
    %v425 = vadd.f32 0.0, %v424
    %v426 = vpop.f32.mrf.mxu0
    %427 = vmatprep.mubr.f32.mxu0 0.0
    %428 = vmatmul.mubr.f32.gmra.mxu0 %v102
    %v429 = vpop.f32.mrf.mxu0
    %v430 = vadd.f32 0.0, %v429
    %v431 = vpop.f32.mrf.mxu0
    %432 = vmatprep.mubr.f32.mxu0 0.0
    %433 = vmatmul.mubr.f32.gmra.mxu0 %v103
    %v434 = vpop.f32.mrf.mxu0
    %v435 = vadd.f32 0.0, %v434
    %v436 = vpop.f32.mrf.mxu0
    %437 = vmatprep.mubr.f32.mxu0 0.0
    %438 = vmatmul.mubr.f32.gmra.mxu0 %v104
    %v439 = vpop.f32.mrf.mxu0
    %v440 = vadd.f32 0.0, %v439
    %v441 = vpop.f32.mrf.mxu0
    %442 = vdwg.mxu0
    %443 = vmatprep.subr.mxu0 0.0
    %444 = vmatpush1.msra.mxu0 %v340
    %445 = vmatprep.subr.mxu0 0.0
    %446 = vmatpush1.msra.mxu0 %v339
    %447 = vmatprep.subr.mxu0 0.0
    %448 = vmatpush1.msra.mxu0 %v338
    %449 = vmatprep.subr.mxu0 0.0
    %450 = vmatpush1.msra.mxu0 %v337
    %451 = vmatprep.subr.mxu0 0.0
    %452 = vmatpush1.msra.mxu0 %v336
    %453 = vmatprep.subr.mxu0 0.0
    %454 = vmatpush1.msra.mxu0 %v335
    %455 = vmatprep.subr.mxu0 0.0
    %456 = vmatpush1.msra.mxu0 %v334
    %457 = vmatprep.subr.mxu0 0.0
    %458 = vmatpush1.msra.mxu0 %v333
    %459 = vmatprep.subr.mxu0 0.0
    %460 = vmatpush1.msra.mxu0 %v332
    %461 = vmatprep.subr.mxu0 0.0
    %462 = vmatpush1.msra.mxu0 %v331
    %463 = vmatprep.subr.mxu0 0.0
    %464 = vmatpush1.msra.mxu0 %v330
    %465 = vmatprep.subr.mxu0 0.0
    %466 = vmatpush1.msra.mxu0 %v329
    %467 = vmatprep.subr.mxu0 0.0
    %468 = vmatpush1.msra.mxu0 %v328
    %469 = vmatprep.subr.mxu0 0.0
    %470 = vmatpush1.msra.mxu0 %v327
    %471 = vmatprep.subr.mxu0 0.0
    %472 = vmatpush1.msra.mxu0 %v326
    %473 = vmatprep.subr.mxu0 0.0
    %474 = vmatpush1.msra.mxu0 %v325
    %475 = vmatprep.subr.mxu0 0.0
    %476 = vmatpush2.msra.mxu0 0.0
    %477 = vmatprep.subr.mxu0 0.0
    %478 = vmatpush2.msra.mxu0 0.0
    %479 = vmatprep.subr.mxu0 0.0
    %480 = vmatpush2.msra.mxu0 0.0
    %481 = vmatprep.subr.mxu0 0.0
    %482 = vmatpush2.msra.mxu0 0.0
    %483 = vmatprep.subr.mxu0 0.0
    %484 = vmatpush2.msra.mxu0 0.0
    %485 = vmatprep.subr.mxu0 0.0
    %486 = vmatpush2.msra.mxu0 0.0
    %487 = vmatprep.subr.mxu0 0.0
    %488 = vmatpush2.msra.mxu0 0.0
    %489 = vmatprep.subr.mxu0 0.0
    %490 = vmatpush2.msra.mxu0 0.0
    %491 = vmatprep.subr.mxu0 0.0
    %492 = vmatpush2.msra.mxu0 0.0
    %493 = vmatprep.subr.mxu0 0.0
    %494 = vmatpush2.msra.mxu0 0.0
    %495 = vmatprep.subr.mxu0 0.0
    %496 = vmatpush2.msra.mxu0 0.0
    %497 = vmatprep.subr.mxu0 0.0
    %498 = vmatpush2.msra.mxu0 0.0
    %499 = vmatprep.subr.mxu0 0.0
    %500 = vmatpush2.msra.mxu0 0.0
    %501 = vmatprep.subr.mxu0 0.0
    %502 = vmatpush2.msra.mxu0 0.0
    %503 = vmatprep.subr.mxu0 0.0
    %504 = vmatpush2.msra.mxu0 0.0
    %505 = vmatprep.subr.mxu0 0.0
    %506 = vmatpush2.msra.mxu0 0.0
    %507 = vmatprep.mubr.f32.mxu0 0.0
    %508 = vmatmul.mubr.f32.gmra.mxu0 %v210
    %v509 = vpop.f32.mrf.mxu0
    %v510 = vadd.f32 %v425, %v509
    %v511 = vpop.f32.mrf.mxu0
    %512 = vmatprep.mubr.f32.mxu0 0.0
    %513 = vmatmul.mubr.f32.gmra.mxu0 %v215
    %v514 = vpop.f32.mrf.mxu0
    %v515 = vadd.f32 %v430, %v514
    %v516 = vpop.f32.mrf.mxu0
    %517 = vmatprep.mubr.f32.mxu0 0.0
    %518 = vmatmul.mubr.f32.gmra.mxu0 %v220
    %v519 = vpop.f32.mrf.mxu0
    %v520 = vadd.f32 %v435, %v519
    %v521 = vpop.f32.mrf.mxu0
    %522 = vmatprep.mubr.f32.mxu0 0.0
    %523 = vmatmul.mubr.f32.gmra.mxu0 %v225
    %v524 = vpop.f32.mrf.mxu0
    %v525 = vadd.f32 %v440, %v524
    %v526 = vpop.f32.mrf.mxu0
    %527 = vdwg.mxu0
    %s528 = scalar_lea.vmem [#allocation7], 256
    %v529 = vld [vmem:[%s528] sm:$0xff]
    %v530 = vld [vmem:[%s528 + $0x8] sm:$0xff]
    %v531 = vld [vmem:[%s528 + $0x10] sm:$0xff]
    %v532 = vld [vmem:[%s528 + $0x18] sm:$0xff]
    %v533 = vld [vmem:[%s528 + $0x20] sm:$0xff]
    %v534 = vld [vmem:[%s528 + $0x28] sm:$0xff]
    %v535 = vld [vmem:[%s528 + $0x30] sm:$0xff]
    %v536 = vld [vmem:[%s528 + $0x38] sm:$0xff]
    %v537 = vld [vmem:[%s528 + $0x40] sm:$0xff]
    %v538 = vld [vmem:[%s528 + $0x48] sm:$0xff]
    %v539 = vld [vmem:[%s528 + $0x50] sm:$0xff]
    %v540 = vld [vmem:[%s528 + $0x58] sm:$0xff]
    %v541 = vld [vmem:[%s528 + $0x60] sm:$0xff]
    %v542 = vld [vmem:[%s528 + $0x68] sm:$0xff]
    %v543 = vld [vmem:[%s528 + $0x70] sm:$0xff]
    %v544 = vld [vmem:[%s528 + $0x78] sm:$0xff]
    %545 = vmatprep.subr.mxu0 0.0
    %546 = vmatpush1.msra.mxu0 %v544
    %547 = vmatprep.subr.mxu0 0.0
    %548 = vmatpush1.msra.mxu0 %v543
    %549 = vmatprep.subr.mxu0 0.0
    %550 = vmatpush1.msra.mxu0 %v542
    %551 = vmatprep.subr.mxu0 0.0
    %552 = vmatpush1.msra.mxu0 %v541
    %553 = vmatprep.subr.mxu0 0.0
    %554 = vmatpush1.msra.mxu0 %v540
    %555 = vmatprep.subr.mxu0 0.0
    %556 = vmatpush1.msra.mxu0 %v539
    %557 = vmatprep.subr.mxu0 0.0
    %558 = vmatpush1.msra.mxu0 %v538
    %559 = vmatprep.subr.mxu0 0.0
    %560 = vmatpush1.msra.mxu0 %v537
    %561 = vmatprep.subr.mxu0 0.0
    %562 = vmatpush1.msra.mxu0 %v536
    %563 = vmatprep.subr.mxu0 0.0
    %564 = vmatpush1.msra.mxu0 %v535
    %565 = vmatprep.subr.mxu0 0.0
    %566 = vmatpush1.msra.mxu0 %v534
    %567 = vmatprep.subr.mxu0 0.0
    %568 = vmatpush1.msra.mxu0 %v533
    %569 = vmatprep.subr.mxu0 0.0
    %570 = vmatpush1.msra.mxu0 %v532
    %571 = vmatprep.subr.mxu0 0.0
    %572 = vmatpush1.msra.mxu0 %v531
    %573 = vmatprep.subr.mxu0 0.0
    %574 = vmatpush1.msra.mxu0 %v530
    %575 = vmatprep.subr.mxu0 0.0
    %576 = vmatpush1.msra.mxu0 %v529
    %577 = vmatprep.subr.mxu0 0.0
    %578 = vmatpush2.msra.mxu0 0.0
    %579 = vmatprep.subr.mxu0 0.0
    %580 = vmatpush2.msra.mxu0 0.0
    %581 = vmatprep.subr.mxu0 0.0
    %582 = vmatpush2.msra.mxu0 0.0
    %583 = vmatprep.subr.mxu0 0.0
    %584 = vmatpush2.msra.mxu0 0.0
    %585 = vmatprep.subr.mxu0 0.0
    %586 = vmatpush2.msra.mxu0 0.0
    %587 = vmatprep.subr.mxu0 0.0
    %588 = vmatpush2.msra.mxu0 0.0
    %589 = vmatprep.subr.mxu0 0.0
    %590 = vmatpush2.msra.mxu0 0.0
    %591 = vmatprep.subr.mxu0 0.0
    %592 = vmatpush2.msra.mxu0 0.0
    %593 = vmatprep.subr.mxu0 0.0
    %594 = vmatpush2.msra.mxu0 0.0
    %595 = vmatprep.subr.mxu0 0.0
    %596 = vmatpush2.msra.mxu0 0.0
    %597 = vmatprep.subr.mxu0 0.0
    %598 = vmatpush2.msra.mxu0 0.0
    %599 = vmatprep.subr.mxu0 0.0
    %600 = vmatpush2.msra.mxu0 0.0
    %601 = vmatprep.subr.mxu0 0.0
    %602 = vmatpush2.msra.mxu0 0.0
    %603 = vmatprep.subr.mxu0 0.0
    %604 = vmatpush2.msra.mxu0 0.0
    %605 = vmatprep.subr.mxu0 0.0
    %606 = vmatpush2.msra.mxu0 0.0
    %607 = vmatprep.subr.mxu0 0.0
    %608 = vmatpush2.msra.mxu0 0.0
    %609 = vmatprep.mubr.f32.mxu0 0.0
    %610 = vmatmul.mubr.f32.gmra.mxu0 %v307
    %v611 = vpop.f32.mrf.mxu0
    %v612 = vadd.f32 0.0, %v611
    %v613 = vpop.f32.mrf.mxu0
    %614 = vmatprep.mubr.f32.mxu0 0.0
    %615 = vmatmul.mubr.f32.gmra.mxu0 %v312
    %v616 = vpop.f32.mrf.mxu0
    %v617 = vadd.f32 0.0, %v616
    %v618 = vpop.f32.mrf.mxu0
    %619 = vmatprep.mubr.f32.mxu0 0.0
    %620 = vmatmul.mubr.f32.gmra.mxu0 %v317
    %v621 = vpop.f32.mrf.mxu0
    %v622 = vadd.f32 0.0, %v621
    %v623 = vpop.f32.mrf.mxu0
    %624 = vmatprep.mubr.f32.mxu0 0.0
    %625 = vmatmul.mubr.f32.gmra.mxu0 %v322
    %v626 = vpop.f32.mrf.mxu0
    %v627 = vadd.f32 0.0, %v626
    %v628 = vpop.f32.mrf.mxu0
    %629 = vdwg.mxu0
    %v630 = vadd.f32 %v510, %v612
    %v631 = vadd.f32 %v515, %v617
    %v632 = vadd.f32 %v520, %v622
    %v633 = vadd.f32 %v525, %v627
    %v634 = vld [vmem:[%s5] sm:$0x1]
    %v635 = vld [vmem:[%s6] sm:$0x1]
    %636 = vmatprep.subr.mxu0 0.0
    %637 = vmatpush1.msra.mxu0 %v129
    %638 = vmatprep.subr.mxu0 0.0
    %639 = vmatpush1.msra.mxu0 %v128
    %640 = vmatprep.subr.mxu0 0.0
    %641 = vmatpush1.msra.mxu0 %v127
    %642 = vmatprep.subr.mxu0 0.0
    %643 = vmatpush1.msra.mxu0 %v126
    %644 = vmatprep.subr.mxu0 0.0
    %645 = vmatpush1.msra.mxu0 %v125
    %646 = vmatprep.subr.mxu0 0.0
    %647 = vmatpush1.msra.mxu0 %v124
    %648 = vmatprep.subr.mxu0 0.0
    %649 = vmatpush1.msra.mxu0 %v123
    %650 = vmatprep.subr.mxu0 0.0
    %651 = vmatpush1.msra.mxu0 %v122
    %652 = vmatprep.subr.mxu0 0.0
    %653 = vmatpush1.msra.mxu0 %v121
    %654 = vmatprep.subr.mxu0 0.0
    %655 = vmatpush1.msra.mxu0 %v120
    %656 = vmatprep.subr.mxu0 0.0
    %657 = vmatpush1.msra.mxu0 %v119
    %658 = vmatprep.subr.mxu0 0.0
    %659 = vmatpush1.msra.mxu0 %v118
    %660 = vmatprep.subr.mxu0 0.0
    %661 = vmatpush1.msra.mxu0 %v117
    %662 = vmatprep.subr.mxu0 0.0
    %663 = vmatpush1.msra.mxu0 %v116
    %664 = vmatprep.subr.mxu0 0.0
    %665 = vmatpush1.msra.mxu0 %v115
    %666 = vmatprep.subr.mxu0 0.0
    %667 = vmatpush1.msra.mxu0 %v114
    %668 = vmatprep.subr.mxu0 0.0
    %669 = vmatpush2.msra.mxu0 0.0
    %670 = vmatprep.subr.mxu0 0.0
    %671 = vmatpush2.msra.mxu0 0.0
    %672 = vmatprep.subr.mxu0 0.0
    %673 = vmatpush2.msra.mxu0 0.0
    %674 = vmatprep.subr.mxu0 0.0
    %675 = vmatpush2.msra.mxu0 0.0
    %676 = vmatprep.subr.mxu0 0.0
    %677 = vmatpush2.msra.mxu0 0.0
    %678 = vmatprep.subr.mxu0 0.0
    %679 = vmatpush2.msra.mxu0 0.0
    %680 = vmatprep.subr.mxu0 0.0
    %681 = vmatpush2.msra.mxu0 0.0
    %682 = vmatprep.subr.mxu0 0.0
    %683 = vmatpush2.msra.mxu0 0.0
    %684 = vmatprep.subr.mxu0 0.0
    %685 = vmatpush2.msra.mxu0 0.0
    %686 = vmatprep.subr.mxu0 0.0
    %687 = vmatpush2.msra.mxu0 0.0
    %688 = vmatprep.subr.mxu0 0.0
    %689 = vmatpush2.msra.mxu0 0.0
    %690 = vmatprep.subr.mxu0 0.0
    %691 = vmatpush2.msra.mxu0 0.0
    %692 = vmatprep.subr.mxu0 0.0
    %693 = vmatpush2.msra.mxu0 0.0
    %694 = vmatprep.subr.mxu0 0.0
    %695 = vmatpush2.msra.mxu0 0.0
    %696 = vmatprep.subr.mxu0 0.0
    %697 = vmatpush2.msra.mxu0 0.0
    %698 = vmatprep.subr.mxu0 0.0
    %699 = vmatpush2.msra.mxu0 0.0
    %700 = vmatprep.mubr.f32.mxu0 0.0
    %701 = vmatmul.mubr.f32.gmra.mxu0 %v630
    %v702 = vpop.f32.mrf.mxu0
    %v703 = vadd.f32 0.0, %v702
    %v704 = vpop.f32.mrf.mxu0
    %705 = vmatprep.mubr.f32.mxu0 0.0
    %706 = vmatmul.mubr.f32.gmra.mxu0 %v631
    %v707 = vpop.f32.mrf.mxu0
    %v708 = vadd.f32 0.0, %v707
    %v709 = vpop.f32.mrf.mxu0
    %710 = vmatprep.mubr.f32.mxu0 0.0
    %711 = vmatmul.mubr.f32.gmra.mxu0 %v632
    %v712 = vpop.f32.mrf.mxu0
    %v713 = vadd.f32 0.0, %v712
    %v714 = vpop.f32.mrf.mxu0
    %715 = vmatprep.mubr.f32.mxu0 0.0
    %716 = vmatmul.mubr.f32.gmra.mxu0 %v633
    %v717 = vpop.f32.mrf.mxu0
    %v718 = vadd.f32 0.0, %v717
    %v719 = vpop.f32.mrf.mxu0
    %720 = vdwg.mxu0
    %v721 = vadd.f32 %v703, %v708
    %v722 = vadd.f32 %v721, %v713
    %v723 = vadd.f32 %v722, %v718
    %v724 = vrot.slane %v723, 4
    %v725 = vadd.f32 %v723, %v724
    %v726 = vrot.slane %v725, 2
    %v727 = vadd.f32 %v725, %v726
    %v728 = vrot.slane %v727, 1
    %v729 = vadd.f32 %v727, %v728
    %v730 = vmul.f32 %v630, %v630
    %v731 = vmul.f32 %v631, %v631
    %v732 = vmul.f32 %v632, %v632
    %v733 = vmul.f32 %v633, %v633
    %734 = vmatprep.subr.mxu0 0.0
    %735 = vmatpush1.msra.mxu0 %v129
    %736 = vmatprep.subr.mxu0 0.0
    %737 = vmatpush1.msra.mxu0 %v128
    %738 = vmatprep.subr.mxu0 0.0
    %739 = vmatpush1.msra.mxu0 %v127
    %740 = vmatprep.subr.mxu0 0.0
    %741 = vmatpush1.msra.mxu0 %v126
    %742 = vmatprep.subr.mxu0 0.0
    %743 = vmatpush1.msra.mxu0 %v125
    %744 = vmatprep.subr.mxu0 0.0
    %745 = vmatpush1.msra.mxu0 %v124
    %746 = vmatprep.subr.mxu0 0.0
    %747 = vmatpush1.msra.mxu0 %v123
    %748 = vmatprep.subr.mxu0 0.0
    %749 = vmatpush1.msra.mxu0 %v122
    %750 = vmatprep.subr.mxu0 0.0
    %751 = vmatpush1.msra.mxu0 %v121
    %752 = vmatprep.subr.mxu0 0.0
    %753 = vmatpush1.msra.mxu0 %v120
    %754 = vmatprep.subr.mxu0 0.0
    %755 = vmatpush1.msra.mxu0 %v119
    %756 = vmatprep.subr.mxu0 0.0
    %757 = vmatpush1.msra.mxu0 %v118
    %758 = vmatprep.subr.mxu0 0.0
    %759 = vmatpush1.msra.mxu0 %v117
    %760 = vmatprep.subr.mxu0 0.0
    %761 = vmatpush1.msra.mxu0 %v116
    %762 = vmatprep.subr.mxu0 0.0
    %763 = vmatpush1.msra.mxu0 %v115
    %764 = vmatprep.subr.mxu0 0.0
    %765 = vmatpush1.msra.mxu0 %v114
    %766 = vmatprep.subr.mxu0 0.0
    %767 = vmatpush2.msra.mxu0 0.0
    %768 = vmatprep.subr.mxu0 0.0
    %769 = vmatpush2.msra.mxu0 0.0
    %770 = vmatprep.subr.mxu0 0.0
    %771 = vmatpush2.msra.mxu0 0.0
    %772 = vmatprep.subr.mxu0 0.0
    %773 = vmatpush2.msra.mxu0 0.0
    %774 = vmatprep.subr.mxu0 0.0
    %775 = vmatpush2.msra.mxu0 0.0
    %776 = vmatprep.subr.mxu0 0.0
    %777 = vmatpush2.msra.mxu0 0.0
    %778 = vmatprep.subr.mxu0 0.0
    %779 = vmatpush2.msra.mxu0 0.0
    %780 = vmatprep.subr.mxu0 0.0
    %781 = vmatpush2.msra.mxu0 0.0
    %782 = vmatprep.subr.mxu0 0.0
    %783 = vmatpush2.msra.mxu0 0.0
    %784 = vmatprep.subr.mxu0 0.0
    %785 = vmatpush2.msra.mxu0 0.0
    %786 = vmatprep.subr.mxu0 0.0
    %787 = vmatpush2.msra.mxu0 0.0
    %788 = vmatprep.subr.mxu0 0.0
    %789 = vmatpush2.msra.mxu0 0.0
    %790 = vmatprep.subr.mxu0 0.0
    %791 = vmatpush2.msra.mxu0 0.0
    %792 = vmatprep.subr.mxu0 0.0
    %793 = vmatpush2.msra.mxu0 0.0
    %794 = vmatprep.subr.mxu0 0.0
    %795 = vmatpush2.msra.mxu0 0.0
    %796 = vmatprep.subr.mxu0 0.0
    %797 = vmatpush2.msra.mxu0 0.0
    %798 = vmatprep.mubr.f32.mxu0 0.0
    %799 = vmatmul.mubr.f32.gmra.mxu0 %v730
    %v800 = vpop.f32.mrf.mxu0
    %v801 = vadd.f32 0.0, %v800
    %v802 = vpop.f32.mrf.mxu0
    %803 = vmatprep.mubr.f32.mxu0 0.0
    %804 = vmatmul.mubr.f32.gmra.mxu0 %v731
    %v805 = vpop.f32.mrf.mxu0
    %v806 = vadd.f32 0.0, %v805
    %v807 = vpop.f32.mrf.mxu0
    %808 = vmatprep.mubr.f32.mxu0 0.0
    %809 = vmatmul.mubr.f32.gmra.mxu0 %v732
    %v810 = vpop.f32.mrf.mxu0
    %v811 = vadd.f32 0.0, %v810
    %v812 = vpop.f32.mrf.mxu0
    %813 = vmatprep.mubr.f32.mxu0 0.0
    %814 = vmatmul.mubr.f32.gmra.mxu0 %v733
    %v815 = vpop.f32.mrf.mxu0
    %v816 = vadd.f32 0.0, %v815
    %v817 = vpop.f32.mrf.mxu0
    %818 = vdwg.mxu0
    %v819 = vadd.f32 %v801, %v806
    %v820 = vadd.f32 %v819, %v811
    %v821 = vadd.f32 %v820, %v816
    %v822 = vrot.slane %v821, 4
    %v823 = vadd.f32 %v821, %v822
    %v824 = vrot.slane %v823, 2
    %v825 = vadd.f32 %v823, %v824
    %v826 = vrot.slane %v825, 1
    %v827 = vadd.f32 %v825, %v826
    %v828 = vmul.f32 %v729, 0.001953125
    %v829 = vmul.f32 %v827, 0.001953125
    %v830 = vmul.f32 %v828, %v828
    %v831 = vsub.f32 %v829, %v830
    %v832 = vadd.f32 %v831, 1e-05
    %v833 = vrsqrt.pop %v832
    %v834 = vsub.f32 %v630, %v828
    %v835 = vsub.f32 %v631, %v828
    %v836 = vsub.f32 %v632, %v828
    %v837 = vsub.f32 %v633, %v828
    %v838 = vmul.f32 %v833, %v634
    %v839 = vlaneseq
    %v840 = vshrl.u32 %v839, 7
    %v841 = vsub.s32 0, %v840
    %v842 = vrot.slane %v838, %v841
    %v843 = vmul.f32 %v834, %v842
    %v844 = vmul.f32 %v835, %v842
    %v845 = vmul.f32 %v836, %v842
    %v846 = vmul.f32 %v837, %v842
    %v848 = vlaneseq
    %v849 = vshrl.u32 %v848, 7
    %v850 = vsub.s32 0, %v849
    %v851 = vrot.slane %v635, %v850
    %v853 = vadd.f32 %v843, %v851
    %v854 = vadd.f32 %v844, %v851
    %v855 = vadd.f32 %v845, %v851
    %v856 = vadd.f32 %v846, %v851
    %v857 = vmax.f32 %v853, 0.0
    %v858 = vmax.f32 %v854, 0.0
    %v859 = vmax.f32 %v855, 0.0
    %v860 = vmax.f32 %v856, 0.0
    %861 = vmatprep.subr.mxu0 0.0
    %862 = vmatpush1.msra.mxu0 0.0
    %863 = vmatprep.subr.mxu0 0.0
    %864 = vmatpush1.msra.mxu0 0.0
    %865 = vmatprep.subr.mxu0 0.0
    %866 = vmatpush1.msra.mxu0 0.0
    %867 = vmatprep.subr.mxu0 0.0
    %868 = vmatpush1.msra.mxu0 0.0
    %869 = vmatprep.subr.mxu0 0.0
    %870 = vmatpush1.msra.mxu0 0.0
    %871 = vmatprep.subr.mxu0 0.0
    %872 = vmatpush1.msra.mxu0 0.0
    %873 = vmatprep.subr.mxu0 0.0
    %874 = vmatpush1.msra.mxu0 0.0
    %875 = vmatprep.subr.mxu0 0.0
    %876 = vmatpush1.msra.mxu0 0.0
    %877 = vmatprep.subr.mxu0 0.0
    %878 = vmatpush1.msra.mxu0 0.0
    %879 = vmatprep.subr.mxu0 0.0
    %880 = vmatpush1.msra.mxu0 0.0
    %881 = vmatprep.subr.mxu0 0.0
    %882 = vmatpush1.msra.mxu0 0.0
    %883 = vmatprep.subr.mxu0 0.0
    %884 = vmatpush1.msra.mxu0 0.0
    %885 = vmatprep.subr.mxu0 0.0
    %886 = vmatpush1.msra.mxu0 %v860
    %887 = vmatprep.subr.mxu0 0.0
    %888 = vmatpush1.msra.mxu0 %v859
    %889 = vmatprep.subr.mxu0 0.0
    %890 = vmatpush1.msra.mxu0 %v858
    %891 = vmatprep.subr.mxu0 0.0
    %892 = vmatpush1.msra.mxu0 %v857
    %893 = vmatprep.subr.mxu0 0.0
    %894 = vmatpush2.msra.mxu0 0.0
    %895 = vmatprep.subr.mxu0 0.0
    %896 = vmatpush2.msra.mxu0 0.0
    %897 = vmatprep.subr.mxu0 0.0
    %898 = vmatpush2.msra.mxu0 0.0
    %899 = vmatprep.subr.mxu0 0.0
    %900 = vmatpush2.msra.mxu0 0.0
    %901 = vmatprep.subr.mxu0 0.0
    %902 = vmatpush2.msra.mxu0 0.0
    %903 = vmatprep.subr.mxu0 0.0
    %904 = vmatpush2.msra.mxu0 0.0
    %905 = vmatprep.subr.mxu0 0.0
    %906 = vmatpush2.msra.mxu0 0.0
    %907 = vmatprep.subr.mxu0 0.0
    %908 = vmatpush2.msra.mxu0 0.0
    %909 = vmatprep.subr.mxu0 0.0
    %910 = vmatpush2.msra.mxu0 0.0
    %911 = vmatprep.subr.mxu0 0.0
    %912 = vmatpush2.msra.mxu0 0.0
    %913 = vmatprep.subr.mxu0 0.0
    %914 = vmatpush2.msra.mxu0 0.0
    %915 = vmatprep.subr.mxu0 0.0
    %916 = vmatpush2.msra.mxu0 0.0
    %917 = vmatprep.subr.mxu0 0.0
    %918 = vmatpush2.msra.mxu0 0.0
    %919 = vmatprep.subr.mxu0 0.0
    %920 = vmatpush2.msra.mxu0 0.0
    %921 = vmatprep.subr.mxu0 0.0
    %922 = vmatpush2.msra.mxu0 0.0
    %923 = vmatprep.subr.mxu0 0.0
    %924 = vmatpush2.msra.mxu0 0.0
    %925 = vmatprep.mubr.f32.mxu0 0.0
    %926 = vmatmul.mubr.f32.gmra.mxu0 %v132
    %v927 = vpop.f32.mrf.mxu0
    %v928 = vadd.f32 0.0, %v927
    %v929 = vpop.f32.mrf.mxu0
    %930 = vmatprep.mubr.f32.mxu0 0.0
    %931 = vmatmul.mubr.f32.gmra.mxu0 %v135
    %v932 = vpop.f32.mrf.mxu0
    %v933 = vadd.f32 0.0, %v932
    %v934 = vpop.f32.mrf.mxu0
    %935 = vmatprep.mubr.f32.mxu0 0.0
    %936 = vmatmul.mubr.f32.gmra.mxu0 %v138
    %v937 = vpop.f32.mrf.mxu0
    %v938 = vadd.f32 0.0, %v937
    %v939 = vpop.f32.mrf.mxu0
    %940 = vmatprep.mubr.f32.mxu0 0.0
    %941 = vmatmul.mubr.f32.gmra.mxu0 %v141
    %v942 = vpop.f32.mrf.mxu0
    %v943 = vadd.f32 0.0, %v942
    %v944 = vpop.f32.mrf.mxu0
    %945 = vdwg.mxu0
    %946 = vmatprep.subr.mxu0 0.0
    %947 = vmatpush1.msra.mxu0 0.0
    %948 = vmatprep.subr.mxu0 0.0
    %949 = vmatpush1.msra.mxu0 0.0
    %950 = vmatprep.subr.mxu0 0.0
    %951 = vmatpush1.msra.mxu0 0.0
    %952 = vmatprep.subr.mxu0 0.0
    %953 = vmatpush1.msra.mxu0 0.0
    %954 = vmatprep.subr.mxu0 0.0
    %955 = vmatpush1.msra.mxu0 0.0
    %956 = vmatprep.subr.mxu0 0.0
    %957 = vmatpush1.msra.mxu0 0.0
    %958 = vmatprep.subr.mxu0 0.0
    %959 = vmatpush1.msra.mxu0 0.0
    %960 = vmatprep.subr.mxu0 0.0
    %961 = vmatpush1.msra.mxu0 0.0
    %962 = vmatprep.subr.mxu0 0.0
    %963 = vmatpush1.msra.mxu0 0.0
    %964 = vmatprep.subr.mxu0 0.0
    %965 = vmatpush1.msra.mxu0 0.0
    %966 = vmatprep.subr.mxu0 0.0
    %967 = vmatpush1.msra.mxu0 0.0
    %968 = vmatprep.subr.mxu0 0.0
    %969 = vmatpush1.msra.mxu0 0.0
    %970 = vmatprep.subr.mxu0 0.0
    %971 = vmatpush1.msra.mxu0 %v860
    %972 = vmatprep.subr.mxu0 0.0
    %973 = vmatpush1.msra.mxu0 %v859
    %974 = vmatprep.subr.mxu0 0.0
    %975 = vmatpush1.msra.mxu0 %v858
    %976 = vmatprep.subr.mxu0 0.0
    %977 = vmatpush1.msra.mxu0 %v857
    %978 = vmatprep.subr.mxu0 0.0
    %979 = vmatpush2.msra.mxu0 0.0
    %980 = vmatprep.subr.mxu0 0.0
    %981 = vmatpush2.msra.mxu0 0.0
    %982 = vmatprep.subr.mxu0 0.0
    %983 = vmatpush2.msra.mxu0 0.0
    %984 = vmatprep.subr.mxu0 0.0
    %985 = vmatpush2.msra.mxu0 0.0
    %986 = vmatprep.subr.mxu0 0.0
    %987 = vmatpush2.msra.mxu0 0.0
    %988 = vmatprep.subr.mxu0 0.0
    %989 = vmatpush2.msra.mxu0 0.0
    %990 = vmatprep.subr.mxu0 0.0
    %991 = vmatpush2.msra.mxu0 0.0
    %992 = vmatprep.subr.mxu0 0.0
    %993 = vmatpush2.msra.mxu0 0.0
    %994 = vmatprep.subr.mxu0 0.0
    %995 = vmatpush2.msra.mxu0 0.0
    %996 = vmatprep.subr.mxu0 0.0
    %997 = vmatpush2.msra.mxu0 0.0
    %998 = vmatprep.subr.mxu0 0.0
    %999 = vmatpush2.msra.mxu0 0.0
    %1000 = vmatprep.subr.mxu0 0.0
    %1001 = vmatpush2.msra.mxu0 0.0
    %1002 = vmatprep.subr.mxu0 0.0
    %1003 = vmatpush2.msra.mxu0 0.0
    %1004 = vmatprep.subr.mxu0 0.0
    %1005 = vmatpush2.msra.mxu0 0.0
    %1006 = vmatprep.subr.mxu0 0.0
    %1007 = vmatpush2.msra.mxu0 0.0
    %1008 = vmatprep.subr.mxu0 0.0
    %1009 = vmatpush2.msra.mxu0 0.0
    %1010 = vmatprep.mubr.f32.mxu0 0.0
    %1011 = vmatmul.mubr.f32.gmra.mxu0 %v229
    %v1012 = vpop.f32.mrf.mxu0
    %v1013 = vadd.f32 0.0, %v1012
    %v1014 = vpop.f32.mrf.mxu0
    %1015 = vmatprep.mubr.f32.mxu0 0.0
    %1016 = vmatmul.mubr.f32.gmra.mxu0 %v232
    %v1017 = vpop.f32.mrf.mxu0
    %v1018 = vadd.f32 0.0, %v1017
    %v1019 = vpop.f32.mrf.mxu0
    %1020 = vmatprep.mubr.f32.mxu0 0.0
    %1021 = vmatmul.mubr.f32.gmra.mxu0 %v235
    %v1022 = vpop.f32.mrf.mxu0
    %v1023 = vadd.f32 0.0, %v1022
    %v1024 = vpop.f32.mrf.mxu0
    %1025 = vmatprep.mubr.f32.mxu0 0.0
    %1026 = vmatmul.mubr.f32.gmra.mxu0 %v238
    %v1027 = vpop.f32.mrf.mxu0
    %v1028 = vadd.f32 0.0, %v1027
    %v1029 = vpop.f32.mrf.mxu0
    %1030 = vdwg.mxu0
    %v1031 = vld [vmem:[#allocation8] sm:$0xff]
    %v1032 = vld [vmem:[#allocation8 + $0x8] sm:$0xff]
    %v1033 = vld [vmem:[#allocation8 + $0x10] sm:$0xff]
    %v1034 = vld [vmem:[#allocation8 + $0x18] sm:$0xff]
    %v1035 = vld [vmem:[#allocation8 + $0x20] sm:$0xff]
    %v1036 = vld [vmem:[#allocation8 + $0x28] sm:$0xff]
    %v1037 = vld [vmem:[#allocation8 + $0x30] sm:$0xff]
    %v1038 = vld [vmem:[#allocation8 + $0x38] sm:$0xff]
    %v1039 = vld [vmem:[#allocation8 + $0x40] sm:$0xff]
    %v1040 = vld [vmem:[#allocation8 + $0x48] sm:$0xff]
    %v1041 = vld [vmem:[#allocation8 + $0x50] sm:$0xff]
    %v1042 = vld [vmem:[#allocation8 + $0x58] sm:$0xff]
    %v1043 = vld [vmem:[#allocation8 + $0x60] sm:$0xff]
    %v1044 = vld [vmem:[#allocation8 + $0x68] sm:$0xff]
    %v1045 = vld [vmem:[#allocation8 + $0x70] sm:$0xff]
    %v1046 = vld [vmem:[#allocation8 + $0x78] sm:$0xff]
    %s1047 = scalar_lea.vmem [#allocation8], 128
    %v1048 = vld [vmem:[%s1047] sm:$0xff]
    %v1049 = vld [vmem:[%s1047 + $0x8] sm:$0xff]
    %v1050 = vld [vmem:[%s1047 + $0x10] sm:$0xff]
    %v1051 = vld [vmem:[%s1047 + $0x18] sm:$0xff]
    %v1052 = vld [vmem:[%s1047 + $0x20] sm:$0xff]
    %v1053 = vld [vmem:[%s1047 + $0x28] sm:$0xff]
    %v1054 = vld [vmem:[%s1047 + $0x30] sm:$0xff]
    %v1055 = vld [vmem:[%s1047 + $0x38] sm:$0xff]
    %v1056 = vld [vmem:[%s1047 + $0x40] sm:$0xff]
    %v1057 = vld [vmem:[%s1047 + $0x48] sm:$0xff]
    %v1058 = vld [vmem:[%s1047 + $0x50] sm:$0xff]
    %v1059 = vld [vmem:[%s1047 + $0x58] sm:$0xff]
    %v1060 = vld [vmem:[%s1047 + $0x60] sm:$0xff]
    %v1061 = vld [vmem:[%s1047 + $0x68] sm:$0xff]
    %v1062 = vld [vmem:[%s1047 + $0x70] sm:$0xff]
    %v1063 = vld [vmem:[%s1047 + $0x78] sm:$0xff]
    %1064 = vmatprep.subr.mxu0 0.0
    %1065 = vmatpush1.msra.mxu0 %v1063
    %1066 = vmatprep.subr.mxu0 0.0
    %1067 = vmatpush1.msra.mxu0 %v1062
    %1068 = vmatprep.subr.mxu0 0.0
    %1069 = vmatpush1.msra.mxu0 %v1061
    %1070 = vmatprep.subr.mxu0 0.0
    %1071 = vmatpush1.msra.mxu0 %v1060
    %1072 = vmatprep.subr.mxu0 0.0
    %1073 = vmatpush1.msra.mxu0 %v1059
    %1074 = vmatprep.subr.mxu0 0.0
    %1075 = vmatpush1.msra.mxu0 %v1058
    %1076 = vmatprep.subr.mxu0 0.0
    %1077 = vmatpush1.msra.mxu0 %v1057
    %1078 = vmatprep.subr.mxu0 0.0
    %1079 = vmatpush1.msra.mxu0 %v1056
    %1080 = vmatprep.subr.mxu0 0.0
    %1081 = vmatpush1.msra.mxu0 %v1055
    %1082 = vmatprep.subr.mxu0 0.0
    %1083 = vmatpush1.msra.mxu0 %v1054
    %1084 = vmatprep.subr.mxu0 0.0
    %1085 = vmatpush1.msra.mxu0 %v1053
    %1086 = vmatprep.subr.mxu0 0.0
    %1087 = vmatpush1.msra.mxu0 %v1052
    %1088 = vmatprep.subr.mxu0 0.0
    %1089 = vmatpush1.msra.mxu0 %v1051
    %1090 = vmatprep.subr.mxu0 0.0
    %1091 = vmatpush1.msra.mxu0 %v1050
    %1092 = vmatprep.subr.mxu0 0.0
    %1093 = vmatpush1.msra.mxu0 %v1049
    %1094 = vmatprep.subr.mxu0 0.0
    %1095 = vmatpush1.msra.mxu0 %v1048
    %1096 = vmatprep.subr.mxu0 0.0
    %1097 = vmatpush2.msra.mxu0 0.0
    %1098 = vmatprep.subr.mxu0 0.0
    %1099 = vmatpush2.msra.mxu0 0.0
    %1100 = vmatprep.subr.mxu0 0.0
    %1101 = vmatpush2.msra.mxu0 0.0
    %1102 = vmatprep.subr.mxu0 0.0
    %1103 = vmatpush2.msra.mxu0 0.0
    %1104 = vmatprep.subr.mxu0 0.0
    %1105 = vmatpush2.msra.mxu0 0.0
    %1106 = vmatprep.subr.mxu0 0.0
    %1107 = vmatpush2.msra.mxu0 0.0
    %1108 = vmatprep.subr.mxu0 0.0
    %1109 = vmatpush2.msra.mxu0 0.0
    %1110 = vmatprep.subr.mxu0 0.0
    %1111 = vmatpush2.msra.mxu0 0.0
    %1112 = vmatprep.subr.mxu0 0.0
    %1113 = vmatpush2.msra.mxu0 0.0
    %1114 = vmatprep.subr.mxu0 0.0
    %1115 = vmatpush2.msra.mxu0 0.0
    %1116 = vmatprep.subr.mxu0 0.0
    %1117 = vmatpush2.msra.mxu0 0.0
    %1118 = vmatprep.subr.mxu0 0.0
    %1119 = vmatpush2.msra.mxu0 0.0
    %1120 = vmatprep.subr.mxu0 0.0
    %1121 = vmatpush2.msra.mxu0 0.0
    %1122 = vmatprep.subr.mxu0 0.0
    %1123 = vmatpush2.msra.mxu0 0.0
    %1124 = vmatprep.subr.mxu0 0.0
    %1125 = vmatpush2.msra.mxu0 0.0
    %1126 = vmatprep.subr.mxu0 0.0
    %1127 = vmatpush2.msra.mxu0 0.0
    %1128 = vmatprep.mubr.f32.mxu0 0.0
    %1129 = vmatmul.mubr.f32.gmra.mxu0 %v857
    %v1130 = vpop.f32.mrf.mxu0
    %v1131 = vadd.f32 0.0, %v1130
    %v1132 = vpop.f32.mrf.mxu0
    %1133 = vmatprep.mubr.f32.mxu0 0.0
    %1134 = vmatmul.mubr.f32.gmra.mxu0 %v858
    %v1135 = vpop.f32.mrf.mxu0
    %v1136 = vadd.f32 0.0, %v1135
    %v1137 = vpop.f32.mrf.mxu0
    %1138 = vmatprep.mubr.f32.mxu0 0.0
    %1139 = vmatmul.mubr.f32.gmra.mxu0 %v859
    %v1140 = vpop.f32.mrf.mxu0
    %v1141 = vadd.f32 0.0, %v1140
    %v1142 = vpop.f32.mrf.mxu0
    %1143 = vmatprep.mubr.f32.mxu0 0.0
    %1144 = vmatmul.mubr.f32.gmra.mxu0 %v860
    %v1145 = vpop.f32.mrf.mxu0
    %v1146 = vadd.f32 0.0, %v1145
    %v1147 = vpop.f32.mrf.mxu0
    %1148 = vdwg.mxu0
    %1149 = vmatprep.subr.mxu0 0.0
    %1150 = vmatpush1.msra.mxu0 %v1046
    %1151 = vmatprep.subr.mxu0 0.0
    %1152 = vmatpush1.msra.mxu0 %v1045
    %1153 = vmatprep.subr.mxu0 0.0
    %1154 = vmatpush1.msra.mxu0 %v1044
    %1155 = vmatprep.subr.mxu0 0.0
    %1156 = vmatpush1.msra.mxu0 %v1043
    %1157 = vmatprep.subr.mxu0 0.0
    %1158 = vmatpush1.msra.mxu0 %v1042
    %1159 = vmatprep.subr.mxu0 0.0
    %1160 = vmatpush1.msra.mxu0 %v1041
    %1161 = vmatprep.subr.mxu0 0.0
    %1162 = vmatpush1.msra.mxu0 %v1040
    %1163 = vmatprep.subr.mxu0 0.0
    %1164 = vmatpush1.msra.mxu0 %v1039
    %1165 = vmatprep.subr.mxu0 0.0
    %1166 = vmatpush1.msra.mxu0 %v1038
    %1167 = vmatprep.subr.mxu0 0.0
    %1168 = vmatpush1.msra.mxu0 %v1037
    %1169 = vmatprep.subr.mxu0 0.0
    %1170 = vmatpush1.msra.mxu0 %v1036
    %1171 = vmatprep.subr.mxu0 0.0
    %1172 = vmatpush1.msra.mxu0 %v1035
    %1173 = vmatprep.subr.mxu0 0.0
    %1174 = vmatpush1.msra.mxu0 %v1034
    %1175 = vmatprep.subr.mxu0 0.0
    %1176 = vmatpush1.msra.mxu0 %v1033
    %1177 = vmatprep.subr.mxu0 0.0
    %1178 = vmatpush1.msra.mxu0 %v1032
    %1179 = vmatprep.subr.mxu0 0.0
    %1180 = vmatpush1.msra.mxu0 %v1031
    %1181 = vmatprep.subr.mxu0 0.0
    %1182 = vmatpush2.msra.mxu0 0.0
    %1183 = vmatprep.subr.mxu0 0.0
    %1184 = vmatpush2.msra.mxu0 0.0
    %1185 = vmatprep.subr.mxu0 0.0
    %1186 = vmatpush2.msra.mxu0 0.0
    %1187 = vmatprep.subr.mxu0 0.0
    %1188 = vmatpush2.msra.mxu0 0.0
    %1189 = vmatprep.subr.mxu0 0.0
    %1190 = vmatpush2.msra.mxu0 0.0
    %1191 = vmatprep.subr.mxu0 0.0
    %1192 = vmatpush2.msra.mxu0 0.0
    %1193 = vmatprep.subr.mxu0 0.0
    %1194 = vmatpush2.msra.mxu0 0.0
    %1195 = vmatprep.subr.mxu0 0.0
    %1196 = vmatpush2.msra.mxu0 0.0
    %1197 = vmatprep.subr.mxu0 0.0
    %1198 = vmatpush2.msra.mxu0 0.0
    %1199 = vmatprep.subr.mxu0 0.0
    %1200 = vmatpush2.msra.mxu0 0.0
    %1201 = vmatprep.subr.mxu0 0.0
    %1202 = vmatpush2.msra.mxu0 0.0
    %1203 = vmatprep.subr.mxu0 0.0
    %1204 = vmatpush2.msra.mxu0 0.0
    %1205 = vmatprep.subr.mxu0 0.0
    %1206 = vmatpush2.msra.mxu0 0.0
    %1207 = vmatprep.subr.mxu0 0.0
    %1208 = vmatpush2.msra.mxu0 0.0
    %1209 = vmatprep.subr.mxu0 0.0
    %1210 = vmatpush2.msra.mxu0 0.0
    %1211 = vmatprep.subr.mxu0 0.0
    %1212 = vmatpush2.msra.mxu0 0.0
    %1213 = vmatprep.mubr.f32.mxu0 0.0
    %1214 = vmatmul.mubr.f32.gmra.mxu0 %v928
    %v1215 = vpop.f32.mrf.mxu0
    %v1216 = vadd.f32 %v1131, %v1215
    %v1217 = vpop.f32.mrf.mxu0
    %1218 = vmatprep.mubr.f32.mxu0 0.0
    %1219 = vmatmul.mubr.f32.gmra.mxu0 %v933
    %v1220 = vpop.f32.mrf.mxu0
    %v1221 = vadd.f32 %v1136, %v1220
    %v1222 = vpop.f32.mrf.mxu0
    %1223 = vmatprep.mubr.f32.mxu0 0.0
    %1224 = vmatmul.mubr.f32.gmra.mxu0 %v938
    %v1225 = vpop.f32.mrf.mxu0
    %v1226 = vadd.f32 %v1141, %v1225
    %v1227 = vpop.f32.mrf.mxu0
    %1228 = vmatprep.mubr.f32.mxu0 0.0
    %1229 = vmatmul.mubr.f32.gmra.mxu0 %v943
    %v1230 = vpop.f32.mrf.mxu0
    %v1231 = vadd.f32 %v1146, %v1230
    %v1232 = vpop.f32.mrf.mxu0
    %1233 = vdwg.mxu0
    %s1234 = scalar_lea.vmem [#allocation8], 256
    %v1235 = vld [vmem:[%s1234] sm:$0xff]
    %v1236 = vld [vmem:[%s1234 + $0x8] sm:$0xff]
    %v1237 = vld [vmem:[%s1234 + $0x10] sm:$0xff]
    %v1238 = vld [vmem:[%s1234 + $0x18] sm:$0xff]
    %v1239 = vld [vmem:[%s1234 + $0x20] sm:$0xff]
    %v1240 = vld [vmem:[%s1234 + $0x28] sm:$0xff]
    %v1241 = vld [vmem:[%s1234 + $0x30] sm:$0xff]
    %v1242 = vld [vmem:[%s1234 + $0x38] sm:$0xff]
    %v1243 = vld [vmem:[%s1234 + $0x40] sm:$0xff]
    %v1244 = vld [vmem:[%s1234 + $0x48] sm:$0xff]
    %v1245 = vld [vmem:[%s1234 + $0x50] sm:$0xff]
    %v1246 = vld [vmem:[%s1234 + $0x58] sm:$0xff]
    %v1247 = vld [vmem:[%s1234 + $0x60] sm:$0xff]
    %v1248 = vld [vmem:[%s1234 + $0x68] sm:$0xff]
    %v1249 = vld [vmem:[%s1234 + $0x70] sm:$0xff]
    %v1250 = vld [vmem:[%s1234 + $0x78] sm:$0xff]
    %1251 = vmatprep.subr.mxu0 0.0
    %1252 = vmatpush1.msra.mxu0 %v1250
    %1253 = vmatprep.subr.mxu0 0.0
    %1254 = vmatpush1.msra.mxu0 %v1249
    %1255 = vmatprep.subr.mxu0 0.0
    %1256 = vmatpush1.msra.mxu0 %v1248
    %1257 = vmatprep.subr.mxu0 0.0
    %1258 = vmatpush1.msra.mxu0 %v1247
    %1259 = vmatprep.subr.mxu0 0.0
    %1260 = vmatpush1.msra.mxu0 %v1246
    %1261 = vmatprep.subr.mxu0 0.0
    %1262 = vmatpush1.msra.mxu0 %v1245
    %1263 = vmatprep.subr.mxu0 0.0
    %1264 = vmatpush1.msra.mxu0 %v1244
    %1265 = vmatprep.subr.mxu0 0.0
    %1266 = vmatpush1.msra.mxu0 %v1243
    %1267 = vmatprep.subr.mxu0 0.0
    %1268 = vmatpush1.msra.mxu0 %v1242
    %1269 = vmatprep.subr.mxu0 0.0
    %1270 = vmatpush1.msra.mxu0 %v1241
    %1271 = vmatprep.subr.mxu0 0.0
    %1272 = vmatpush1.msra.mxu0 %v1240
    %1273 = vmatprep.subr.mxu0 0.0
    %1274 = vmatpush1.msra.mxu0 %v1239
    %1275 = vmatprep.subr.mxu0 0.0
    %1276 = vmatpush1.msra.mxu0 %v1238
    %1277 = vmatprep.subr.mxu0 0.0
    %1278 = vmatpush1.msra.mxu0 %v1237
    %1279 = vmatprep.subr.mxu0 0.0
    %1280 = vmatpush1.msra.mxu0 %v1236
    %1281 = vmatprep.subr.mxu0 0.0
    %1282 = vmatpush1.msra.mxu0 %v1235
    %1283 = vmatprep.subr.mxu0 0.0
    %1284 = vmatpush2.msra.mxu0 0.0
    %1285 = vmatprep.subr.mxu0 0.0
    %1286 = vmatpush2.msra.mxu0 0.0
    %1287 = vmatprep.subr.mxu0 0.0
    %1288 = vmatpush2.msra.mxu0 0.0
    %1289 = vmatprep.subr.mxu0 0.0
    %1290 = vmatpush2.msra.mxu0 0.0
    %1291 = vmatprep.subr.mxu0 0.0
    %1292 = vmatpush2.msra.mxu0 0.0
    %1293 = vmatprep.subr.mxu0 0.0
    %1294 = vmatpush2.msra.mxu0 0.0
    %1295 = vmatprep.subr.mxu0 0.0
    %1296 = vmatpush2.msra.mxu0 0.0
    %1297 = vmatprep.subr.mxu0 0.0
    %1298 = vmatpush2.msra.mxu0 0.0
    %1299 = vmatprep.subr.mxu0 0.0
    %1300 = vmatpush2.msra.mxu0 0.0
    %1301 = vmatprep.subr.mxu0 0.0
    %1302 = vmatpush2.msra.mxu0 0.0
    %1303 = vmatprep.subr.mxu0 0.0
    %1304 = vmatpush2.msra.mxu0 0.0
    %1305 = vmatprep.subr.mxu0 0.0
    %1306 = vmatpush2.msra.mxu0 0.0
    %1307 = vmatprep.subr.mxu0 0.0
    %1308 = vmatpush2.msra.mxu0 0.0
    %1309 = vmatprep.subr.mxu0 0.0
    %1310 = vmatpush2.msra.mxu0 0.0
    %1311 = vmatprep.subr.mxu0 0.0
    %1312 = vmatpush2.msra.mxu0 0.0
    %1313 = vmatprep.subr.mxu0 0.0
    %1314 = vmatpush2.msra.mxu0 0.0
    %1315 = vmatprep.mubr.f32.mxu0 0.0
    %1316 = vmatmul.mubr.f32.gmra.mxu0 %v1013
    %v1317 = vpop.f32.mrf.mxu0
    %v1318 = vadd.f32 0.0, %v1317
    %v1319 = vpop.f32.mrf.mxu0
    %1320 = vmatprep.mubr.f32.mxu0 0.0
    %1321 = vmatmul.mubr.f32.gmra.mxu0 %v1018
    %v1322 = vpop.f32.mrf.mxu0
    %v1323 = vadd.f32 0.0, %v1322
    %v1324 = vpop.f32.mrf.mxu0
    %1325 = vmatprep.mubr.f32.mxu0 0.0
    %1326 = vmatmul.mubr.f32.gmra.mxu0 %v1023
    %v1327 = vpop.f32.mrf.mxu0
    %v1328 = vadd.f32 0.0, %v1327
    %v1329 = vpop.f32.mrf.mxu0
    %1330 = vmatprep.mubr.f32.mxu0 0.0
    %1331 = vmatmul.mubr.f32.gmra.mxu0 %v1028
    %v1332 = vpop.f32.mrf.mxu0
    %v1333 = vadd.f32 0.0, %v1332
    %v1334 = vpop.f32.mrf.mxu0
    %1335 = vdwg.mxu0
    %v1336 = vadd.f32 %v1216, %v1318
    %v1337 = vadd.f32 %v1221, %v1323
    %v1338 = vadd.f32 %v1226, %v1328
    %v1339 = vadd.f32 %v1231, %v1333
    %v1340 = vld [vmem:[%s7] sm:$0x1]
    %v1341 = vld [vmem:[%s8] sm:$0x1]
    %1342 = vmatprep.subr.mxu0 0.0
    %1343 = vmatpush1.msra.mxu0 %v129
    %1344 = vmatprep.subr.mxu0 0.0
    %1345 = vmatpush1.msra.mxu0 %v128
    %1346 = vmatprep.subr.mxu0 0.0
    %1347 = vmatpush1.msra.mxu0 %v127
    %1348 = vmatprep.subr.mxu0 0.0
    %1349 = vmatpush1.msra.mxu0 %v126
    %1350 = vmatprep.subr.mxu0 0.0
    %1351 = vmatpush1.msra.mxu0 %v125
    %1352 = vmatprep.subr.mxu0 0.0
    %1353 = vmatpush1.msra.mxu0 %v124
    %1354 = vmatprep.subr.mxu0 0.0
    %1355 = vmatpush1.msra.mxu0 %v123
    %1356 = vmatprep.subr.mxu0 0.0
    %1357 = vmatpush1.msra.mxu0 %v122
    %1358 = vmatprep.subr.mxu0 0.0
    %1359 = vmatpush1.msra.mxu0 %v121
    %1360 = vmatprep.subr.mxu0 0.0
    %1361 = vmatpush1.msra.mxu0 %v120
    %1362 = vmatprep.subr.mxu0 0.0
    %1363 = vmatpush1.msra.mxu0 %v119
    %1364 = vmatprep.subr.mxu0 0.0
    %1365 = vmatpush1.msra.mxu0 %v118
    %1366 = vmatprep.subr.mxu0 0.0
    %1367 = vmatpush1.msra.mxu0 %v117
    %1368 = vmatprep.subr.mxu0 0.0
    %1369 = vmatpush1.msra.mxu0 %v116
    %1370 = vmatprep.subr.mxu0 0.0
    %1371 = vmatpush1.msra.mxu0 %v115
    %1372 = vmatprep.subr.mxu0 0.0
    %1373 = vmatpush1.msra.mxu0 %v114
    %1374 = vmatprep.subr.mxu0 0.0
    %1375 = vmatpush2.msra.mxu0 0.0
    %1376 = vmatprep.subr.mxu0 0.0
    %1377 = vmatpush2.msra.mxu0 0.0
    %1378 = vmatprep.subr.mxu0 0.0
    %1379 = vmatpush2.msra.mxu0 0.0
    %1380 = vmatprep.subr.mxu0 0.0
    %1381 = vmatpush2.msra.mxu0 0.0
    %1382 = vmatprep.subr.mxu0 0.0
    %1383 = vmatpush2.msra.mxu0 0.0
    %1384 = vmatprep.subr.mxu0 0.0
    %1385 = vmatpush2.msra.mxu0 0.0
    %1386 = vmatprep.subr.mxu0 0.0
    %1387 = vmatpush2.msra.mxu0 0.0
    %1388 = vmatprep.subr.mxu0 0.0
    %1389 = vmatpush2.msra.mxu0 0.0
    %1390 = vmatprep.subr.mxu0 0.0
    %1391 = vmatpush2.msra.mxu0 0.0
    %1392 = vmatprep.subr.mxu0 0.0
    %1393 = vmatpush2.msra.mxu0 0.0
    %1394 = vmatprep.subr.mxu0 0.0
    %1395 = vmatpush2.msra.mxu0 0.0
    %1396 = vmatprep.subr.mxu0 0.0
    %1397 = vmatpush2.msra.mxu0 0.0
    %1398 = vmatprep.subr.mxu0 0.0
    %1399 = vmatpush2.msra.mxu0 0.0
    %1400 = vmatprep.subr.mxu0 0.0
    %1401 = vmatpush2.msra.mxu0 0.0
    %1402 = vmatprep.subr.mxu0 0.0
    %1403 = vmatpush2.msra.mxu0 0.0
    %1404 = vmatprep.subr.mxu0 0.0
    %1405 = vmatpush2.msra.mxu0 0.0
    %1406 = vmatprep.mubr.f32.mxu0 0.0
    %1407 = vmatmul.mubr.f32.gmra.mxu0 %v1336
    %v1408 = vpop.f32.mrf.mxu0
    %v1409 = vadd.f32 0.0, %v1408
    %v1410 = vpop.f32.mrf.mxu0
    %1411 = vmatprep.mubr.f32.mxu0 0.0
    %1412 = vmatmul.mubr.f32.gmra.mxu0 %v1337
    %v1413 = vpop.f32.mrf.mxu0
    %v1414 = vadd.f32 0.0, %v1413
    %v1415 = vpop.f32.mrf.mxu0
    %1416 = vmatprep.mubr.f32.mxu0 0.0
    %1417 = vmatmul.mubr.f32.gmra.mxu0 %v1338
    %v1418 = vpop.f32.mrf.mxu0
    %v1419 = vadd.f32 0.0, %v1418
    %v1420 = vpop.f32.mrf.mxu0
    %1421 = vmatprep.mubr.f32.mxu0 0.0
    %1422 = vmatmul.mubr.f32.gmra.mxu0 %v1339
    %v1423 = vpop.f32.mrf.mxu0
    %v1424 = vadd.f32 0.0, %v1423
    %v1425 = vpop.f32.mrf.mxu0
    %1426 = vdwg.mxu0
    %v1427 = vadd.f32 %v1409, %v1414
    %v1428 = vadd.f32 %v1427, %v1419
    %v1429 = vadd.f32 %v1428, %v1424
    %v1430 = vrot.slane %v1429, 4
    %v1431 = vadd.f32 %v1429, %v1430
    %v1432 = vrot.slane %v1431, 2
    %v1433 = vadd.f32 %v1431, %v1432
    %v1434 = vrot.slane %v1433, 1
    %v1435 = vadd.f32 %v1433, %v1434
    %v1436 = vmul.f32 %v1336, %v1336
    %v1437 = vmul.f32 %v1337, %v1337
    %v1438 = vmul.f32 %v1338, %v1338
    %v1439 = vmul.f32 %v1339, %v1339
    %1440 = vmatprep.subr.mxu0 0.0
    %1441 = vmatpush1.msra.mxu0 %v129
    %1442 = vmatprep.subr.mxu0 0.0
    %1443 = vmatpush1.msra.mxu0 %v128
    %1444 = vmatprep.subr.mxu0 0.0
    %1445 = vmatpush1.msra.mxu0 %v127
    %1446 = vmatprep.subr.mxu0 0.0
    %1447 = vmatpush1.msra.mxu0 %v126
    %1448 = vmatprep.subr.mxu0 0.0
    %1449 = vmatpush1.msra.mxu0 %v125
    %1450 = vmatprep.subr.mxu0 0.0
    %1451 = vmatpush1.msra.mxu0 %v124
    %1452 = vmatprep.subr.mxu0 0.0
    %1453 = vmatpush1.msra.mxu0 %v123
    %1454 = vmatprep.subr.mxu0 0.0
    %1455 = vmatpush1.msra.mxu0 %v122
    %1456 = vmatprep.subr.mxu0 0.0
    %1457 = vmatpush1.msra.mxu0 %v121
    %1458 = vmatprep.subr.mxu0 0.0
    %1459 = vmatpush1.msra.mxu0 %v120
    %1460 = vmatprep.subr.mxu0 0.0
    %1461 = vmatpush1.msra.mxu0 %v119
    %1462 = vmatprep.subr.mxu0 0.0
    %1463 = vmatpush1.msra.mxu0 %v118
    %1464 = vmatprep.subr.mxu0 0.0
    %1465 = vmatpush1.msra.mxu0 %v117
    %1466 = vmatprep.subr.mxu0 0.0
    %1467 = vmatpush1.msra.mxu0 %v116
    %1468 = vmatprep.subr.mxu0 0.0
    %1469 = vmatpush1.msra.mxu0 %v115
    %1470 = vmatprep.subr.mxu0 0.0
    %1471 = vmatpush1.msra.mxu0 %v114
    %1472 = vmatprep.subr.mxu0 0.0
    %1473 = vmatpush2.msra.mxu0 0.0
    %1474 = vmatprep.subr.mxu0 0.0
    %1475 = vmatpush2.msra.mxu0 0.0
    %1476 = vmatprep.subr.mxu0 0.0
    %1477 = vmatpush2.msra.mxu0 0.0
    %1478 = vmatprep.subr.mxu0 0.0
    %1479 = vmatpush2.msra.mxu0 0.0
    %1480 = vmatprep.subr.mxu0 0.0
    %1481 = vmatpush2.msra.mxu0 0.0
    %1482 = vmatprep.subr.mxu0 0.0
    %1483 = vmatpush2.msra.mxu0 0.0
    %1484 = vmatprep.subr.mxu0 0.0
    %1485 = vmatpush2.msra.mxu0 0.0
    %1486 = vmatprep.subr.mxu0 0.0
    %1487 = vmatpush2.msra.mxu0 0.0
    %1488 = vmatprep.subr.mxu0 0.0
    %1489 = vmatpush2.msra.mxu0 0.0
    %1490 = vmatprep.subr.mxu0 0.0
    %1491 = vmatpush2.msra.mxu0 0.0
    %1492 = vmatprep.subr.mxu0 0.0
    %1493 = vmatpush2.msra.mxu0 0.0
    %1494 = vmatprep.subr.mxu0 0.0
    %1495 = vmatpush2.msra.mxu0 0.0
    %1496 = vmatprep.subr.mxu0 0.0
    %1497 = vmatpush2.msra.mxu0 0.0
    %1498 = vmatprep.subr.mxu0 0.0
    %1499 = vmatpush2.msra.mxu0 0.0
    %1500 = vmatprep.subr.mxu0 0.0
    %1501 = vmatpush2.msra.mxu0 0.0
    %1502 = vmatprep.subr.mxu0 0.0
    %1503 = vmatpush2.msra.mxu0 0.0
    %1504 = vmatprep.mubr.f32.mxu0 0.0
    %1505 = vmatmul.mubr.f32.gmra.mxu0 %v1436
    %v1506 = vpop.f32.mrf.mxu0
    %v1507 = vadd.f32 0.0, %v1506
    %v1508 = vpop.f32.mrf.mxu0
    %1509 = vmatprep.mubr.f32.mxu0 0.0
    %1510 = vmatmul.mubr.f32.gmra.mxu0 %v1437
    %v1511 = vpop.f32.mrf.mxu0
    %v1512 = vadd.f32 0.0, %v1511
    %v1513 = vpop.f32.mrf.mxu0
    %1514 = vmatprep.mubr.f32.mxu0 0.0
    %1515 = vmatmul.mubr.f32.gmra.mxu0 %v1438
    %v1516 = vpop.f32.mrf.mxu0
    %v1517 = vadd.f32 0.0, %v1516
    %v1518 = vpop.f32.mrf.mxu0
    %1519 = vmatprep.mubr.f32.mxu0 0.0
    %1520 = vmatmul.mubr.f32.gmra.mxu0 %v1439
    %v1521 = vpop.f32.mrf.mxu0
    %v1522 = vadd.f32 0.0, %v1521
    %v1523 = vpop.f32.mrf.mxu0
    %1524 = vdwg.mxu0
    %v1525 = vadd.f32 %v1507, %v1512
    %v1526 = vadd.f32 %v1525, %v1517
    %v1527 = vadd.f32 %v1526, %v1522
    %v1528 = vrot.slane %v1527, 4
    %v1529 = vadd.f32 %v1527, %v1528
    %v1530 = vrot.slane %v1529, 2
    %v1531 = vadd.f32 %v1529, %v1530
    %v1532 = vrot.slane %v1531, 1
    %v1533 = vadd.f32 %v1531, %v1532
    %v1534 = vmul.f32 %v1435, 0.001953125
    %v1535 = vmul.f32 %v1533, 0.001953125
    %v1536 = vmul.f32 %v1534, %v1534
    %v1537 = vsub.f32 %v1535, %v1536
    %v1538 = vadd.f32 %v1537, 1e-05
    %v1539 = vrsqrt.pop %v1538
    %v1540 = vsub.f32 %v1336, %v1534
    %v1541 = vsub.f32 %v1337, %v1534
    %v1542 = vsub.f32 %v1338, %v1534
    %v1543 = vsub.f32 %v1339, %v1534
    %v1544 = vmul.f32 %v1539, %v1340
    %v1545 = vlaneseq
    %v1546 = vshrl.u32 %v1545, 7
    %v1547 = vsub.s32 0, %v1546
    %v1548 = vrot.slane %v1544, %v1547
    %v1549 = vmul.f32 %v1540, %v1548
    %v1550 = vmul.f32 %v1541, %v1548
    %v1551 = vmul.f32 %v1542, %v1548
    %v1552 = vmul.f32 %v1543, %v1548
    %v1554 = vlaneseq
    %v1555 = vshrl.u32 %v1554, 7
    %v1556 = vsub.s32 0, %v1555
    %v1557 = vrot.slane %v1341, %v1556
    %v1559 = vadd.f32 %v1549, %v1557
    %v1560 = vadd.f32 %v1550, %v1557
    %v1561 = vadd.f32 %v1551, %v1557
    %v1562 = vadd.f32 %v1552, %v1557
    %v1563 = vadd.f32 %v1559, %v101
    %v1564 = vadd.f32 %v1560, %v102
    %v1565 = vadd.f32 %v1561, %v103
    %v1566 = vadd.f32 %v1562, %v104
    %v1567 = vmax.f32 %v1563, 0.0
    %v1568 = vmax.f32 %v1564, 0.0
    %v1569 = vmax.f32 %v1565, 0.0
    %v1570 = vmax.f32 %v1566, 0.0
    %1571 = vst [vmem:[#allocation11] sm:$0xff] %v1567
    %1572 = vst [vmem:[#allocation11 + $0x8] sm:$0xff] %v1568
    %1573 = vst [vmem:[#allocation11 + $0x10] sm:$0xff] %v1569
    %1574 = vst [vmem:[#allocation11 + $0x18] sm:$0xff] %v1570
    // Predicated region
    $region58: #{tpu_custom_call.1} parent=1 // pred_check
      _
    $region59: #{tpu_custom_call.1} parent=1 // pred_check_branch
      %1576 = sbr.rel (0) target = $region61
    $region60: #{tpu_custom_call.1} parent=1 // pred_region
      %s1578 = ssub.s32 512, 512
      %1579 = vsyncadd [#allocation4], %s1578
      %s1580 = sshll.u32 [#allocation11], 4
      %s1581 = int_to_ptr.vmem [resolvable:$true] %s1580
      %1586 = dma.vmem_to_hbm [thread:$0]  %s1581, 512, %s9, [#allocation4], 128, 128, 8
    $region61: #{tpu_custom_call.1} parent=1 // pred_fallthru
      _
    // Predicated region
    $region62: #{tpu_custom_call.1} parent=1 // pred_check
      _
    $region63: #{tpu_custom_call.1} parent=1 // pred_check_branch
      %1588 = sbr.rel (0) target = $region65
    $region64: #{tpu_custom_call.1} parent=1 // pred_region
      %1589 = dma.done [#allocation4], 512
    $region65: #{tpu_custom_call.1} parent=1 // pred_fallthru
      _
    %1590 = vsyncpa [#allocation3], 1
    %1591 = vsyncpa [#allocation6], 1
    %1592 = vsyncpa [#allocation9], 1
    %1593 = vsyncpa [#allocation4], 1

</llo_original>
